<compile_context>
chip_gen: v6e
topology: v6e:2x2x1
jax: 0.10.0
libtpu: 0.0.40
codegen_flags: <defaults>
</compile_context>

<pallas_src>
import functools
import math

import jax
import jax.numpy as jnp
from jax import lax
from jax.experimental import pallas as pl
from jax.experimental.pallas import tpu as pltpu

LN_EPS = 1e-5  # torch.nn.LayerNorm default


def _layer_norm(x, gamma, beta):
    mu = jnp.mean(x, axis=-1, keepdims=True)
    var = jnp.mean((x - mu) ** 2, axis=-1, keepdims=True)
    return (x - mu) * lax.rsqrt(var + LN_EPS) * gamma + beta


def _make_kernel(bt, n, tk, d, d_group, matmul_dtype, approx_recip):
    n_heads = d // d_group
    bh = bt * n_heads
    m = bt * n
    nkv = n // tk
    scale = 1.0 / float(d_group) ** 0.5
    cd = matmul_dtype

    def kernel(x_ref, pa_ref, pm_ref,
               wqkv_ref, bqkv_ref, wo_ref, wf1_ref, bf1_ref, wf2_ref, vecs_ref,
               o_ref,
               q_sc, k_sc, v_sc, m_sc, l_sc, acc_sc, attn_sc):
        kv = pl.program_id(1)

        # ---- once per batch block: fused QKV projection, single cast, head split
        @pl.when(kv == 0)
        def _init():
            xf = x_ref[...].reshape(m, d).astype(jnp.float32)
            qkv = jnp.dot(xf.astype(cd), wqkv_ref[...],
                          preferred_element_type=jnp.float32) + bqkv_ref[...]
            qkv = qkv.astype(cd)  # one cast of the whole (M, 3D) slab
            # Tiny static loop, runs once per batch block (NOT in the kv hot loop);
            # all reshapes below are free leading-dim splits.
            for h in range(n_heads):
                lo = h * d_group
                q_sc[:, h] = qkv[:, lo:lo + d_group].reshape(bt, n, d_group)
                k_sc[:, h] = qkv[:, d + lo:d + lo + d_group].reshape(bt, n, d_group)
                v_sc[:, h] = qkv[:, 2 * d + lo:2 * d + lo + d_group].reshape(bt, n, d_group)
            m_sc[...] = jnp.full((bh, n, 1), -jnp.inf, jnp.float32)
            l_sc[...] = jnp.zeros((bh, n, 1), jnp.float32)
            acc_sc[...] = jnp.zeros((bh, n, d_group), jnp.float32)

        # ---- every kv block: head-batched scores + online softmax (flash style)
        start = pl.multiple_of(kv * tk, tk)
        q3 = q_sc[...].reshape(bh, n, d_group)                          # (B*H, N, dg)
        k3 = k_sc[:, :, pl.ds(start, tk), :].reshape(bh, tk, d_group)   # (B*H, Tk, dg)
        v3 = v_sc[:, :, pl.ds(start, tk), :].reshape(bh, tk, d_group)

        s3 = lax.dot_general(q3, k3, (((2,), (2,)), ((0,), (0,))),
                             preferred_element_type=jnp.float32) * scale
        pa = pa_ref[...].astype(jnp.float32)   # (bt, N, Tk) shipped in bias_dtype
        pm = pm_ref[...].astype(jnp.float32)
        s4 = s3.reshape(bt, n_heads, n, tk)
        s4 = s4 * pm[:, None] + pa[:, None]
        s3 = s4.reshape(bh, n, tk)

        m_prev = m_sc[...]
        m_new = jnp.maximum(m_prev, jnp.max(s3, axis=-1, keepdims=True))
        alpha = jnp.exp(m_prev - m_new)
        p = jnp.exp(s3 - m_new)
        l_sc[...] = alpha * l_sc[...] + jnp.sum(p, axis=-1, keepdims=True)
        pv = lax.dot_general(p.astype(cd), v3, (((2,), (1,)), ((0,), (0,))),
                             preferred_element_type=jnp.float32)
        acc_sc[...] = alpha * acc_sc[...] + pv
        m_sc[...] = m_new

        # ---- once per batch block: W_o, residuals, LayerNorms, FeedForward
        @pl.when(kv == nkv - 1)
        def _finalize():
            bo, g1, be1, g2, be2, bf2 = (vecs_ref[i:i + 1, :] for i in range(6))
            if approx_recip:
                inv_l = pl.reciprocal(l_sc[...], approx=True)
            else:
                inv_l = 1.0 / l_sc[...]
            attn = (acc_sc[...] * inv_l).reshape(bt, n_heads, n, d_group)
            for h in range(n_heads):      # layout plumbing, once per block
                lo = h * d_group
                attn_sc[:, :, lo:lo + d_group] = attn[:, h]
            # Single contraction of depth D through W_o (no per-head matmuls).
            xf = x_ref[...].reshape(m, d).astype(jnp.float32)
            sa = jnp.dot(attn_sc[...].reshape(m, d).astype(cd), wo_ref[...],
                         preferred_element_type=jnp.float32) + bo

            # norm == 'post':  y = LN1(SA(x) + x);  out = LN2(FF(y) + y)
            y = _layer_norm(sa + xf, g1, be1)
            h1 = jnp.maximum(jnp.dot(y.astype(cd), wf1_ref[...],
                                     preferred_element_type=jnp.float32) + bf1_ref[...],
                             0.0)
            ff = jnp.dot(h1.astype(cd), wf2_ref[...],
                         preferred_element_type=jnp.float32) + bf2
            out = _layer_norm(ff + y, g2, be2)
            o_ref[...] = out.reshape(bt, n, d).astype(o_ref.dtype)

    return kernel


def _pick_block_b(batch, n_tokens, target_rows=256, min_grid=2):
    """Largest divisor of batch with bt*N near the MXU row target, while keeping
    at least `min_grid` parallel grid steps (keeps both v7x TCs busy + pipelining)."""
    limit = max(1, target_rows // max(n_tokens, 1))
    if batch >= min_grid:
        limit = min(limit, batch // min_grid)
    bt = max(1, min(batch, limit))
    while batch % bt:
        bt -= 1
    return bt


def _pick_block_k(n_keys, target=512):
    """Key-block size for the positional-bias streaming (128-multiple or full N)."""
    if n_keys <= target:
        return n_keys
    for cand in (target, 384, 256, 128):
        if cand % 128 == 0 and n_keys % cand == 0:
            return cand
    return n_keys


def _padded_bytes(shape, dtype):
    s = list(shape)
    if len(s) >= 1:
        s[-1] = -(-s[-1] // 128) * 128
    if len(s) >= 2:
        s[-2] = -(-s[-2] // 8) * 8
    return math.prod(s) * jnp.dtype(dtype).itemsize


def _vmem_limit_bytes(bt, n, tk, d, d_group, x_dtype, bias_dtype, matmul_dtype,
                      param_arrays):
    h = d // d_group
    bh = bt * h
    io = 2 * (2 * _padded_bytes((bt, n, d), x_dtype)           # x + out, double-buffered
              + 2 * _padded_bytes((bt, n, tk), bias_dtype))    # pa + pm, double-buffered
    params = sum(_padded_bytes(p.shape, p.dtype) for p in param_arrays)
    scratch = (3 * _padded_bytes((bt, h, n, d_group), matmul_dtype)
               + 2 * _padded_bytes((bh, n, 1), jnp.float32)
               + _padded_bytes((bh, n, d_group), jnp.float32)
               + _padded_bytes((bt, n, d), jnp.float32))
    temps = 4 * _padded_bytes((bh, n, tk), jnp.float32)        # s / p / bias broadcast
    est = int(1.25 * (io + params + scratch + temps)) + (4 << 20)
    try:
        cap = int(pltpu.get_tpu_info().vmem_capacity_bytes)
    except Exception:  # pragma: no cover - conservative fallback (v7x-sized)
        cap = 64 << 20
    return max(32 << 20, min(est, int(cap * 0.9)))


def _cost_estimate(B, N, D, F, d_group, bias_dtype, x_dtype):
    H = D // d_group
    flops = (2 * B * N * D * (3 * D)        # QKV projection
             + 2 * B * N * N * D            # Q K^T (all heads)
             + 2 * B * N * N * D            # P V
             + 2 * B * N * D * D            # W_o
             + 2 * B * N * D * F            # FF1
             + 2 * B * N * F * D)           # FF2
    transcendentals = B * H * N * N + 4 * B * N
    bytes_accessed = (2 * B * N * D * jnp.dtype(x_dtype).itemsize
                      + 2 * B * N * N * jnp.dtype(bias_dtype).itemsize)
    return pl.CostEstimate(flops=int(flops), transcendentals=int(transcendentals),
                           bytes_accessed=int(bytes_accessed))


def _pack_params(params, matmul_dtype):
    cd = matmul_dtype
    wqkv = jnp.concatenate([params["wq"], params["wk"], params["wv"]], axis=1).astype(cd)
    bqkv = jnp.concatenate([params["bq"], params["bk"], params["bv"]], axis=1)   # f32
    vecs = jnp.concatenate([params["bo"], params["g1"], params["be1"],
                            params["g2"], params["be2"], params["bf2"]], axis=0)  # (6, D) f32
    return (wqkv, bqkv, params["wo"].astype(cd), params["wf1"].astype(cd),
            params["bf1"], params["wf2"].astype(cd), vecs)


@functools.partial(jax.jit, static_argnames=("d_group", "block_b", "block_k",
                                             "matmul_dtype", "bias_dtype",
                                             "approx_recip"))
def encoder_layer_forward(x, pos_add, pos_mult, params, *, d_group,
                          block_b=None, block_k=None,
                          matmul_dtype=jnp.bfloat16, bias_dtype=jnp.bfloat16,
                          approx_recip=True):
    B, N, D = x.shape
    assert D % d_group == 0, (D, d_group)
    H = D // d_group
    bt = block_b if block_b is not None else _pick_block_b(B, N)
    tk = block_k if block_k is not None else _pick_block_k(N)
    assert B % bt == 0, (B, bt)
    assert N % tk == 0, (N, tk)

    plist = _pack_params(params, matmul_dtype)   # wqkv, bqkv, wo, wf1, bf1, wf2, vecs
    kernel = _make_kernel(bt, N, tk, D, d_group, matmul_dtype, approx_recip)

    pa = pos_add.astype(bias_dtype)    # dominant HBM traffic -> ship in bf16
    pm = pos_mult.astype(bias_dtype)

    x_map = lambda b, kv: (b, 0, 0)
    bias_map = lambda b, kv: (b, 0, kv)
    param_map = lambda b, kv: (0, 0)

    in_specs = ([pl.BlockSpec((bt, N, D), x_map),       # x (resident across kv)
                 pl.BlockSpec((bt, N, tk), bias_map),   # positional adding bias
                 pl.BlockSpec((bt, N, tk), bias_map)]   # positional multiplying bias
                + [pl.BlockSpec(p.shape, param_map) for p in plist])

    scratch_shapes = [
        pltpu.VMEM((bt, H, N, d_group), matmul_dtype),   # Q (head-split)
        pltpu.VMEM((bt, H, N, d_group), matmul_dtype),   # K
        pltpu.VMEM((bt, H, N, d_group), matmul_dtype),   # V
        pltpu.VMEM((bt * H, N, 1), jnp.float32),         # running max
        pltpu.VMEM((bt * H, N, 1), jnp.float32),         # running sum
        pltpu.VMEM((bt * H, N, d_group), jnp.float32),   # running attention accumulator
        pltpu.VMEM((bt, N, D), jnp.float32),             # packed attention output
    ]

    F = params["wf1"].shape[1]
    return pl.pallas_call(
        kernel,
        out_shape=jax.ShapeDtypeStruct((B, N, D), x.dtype),
        grid=(B // bt, N // tk),
        in_specs=in_specs,
        out_specs=pl.BlockSpec((bt, N, D), x_map),
        scratch_shapes=scratch_shapes,
        compiler_params=pltpu.CompilerParams(
            dimension_semantics=("parallel", "arbitrary"),
            vmem_limit_bytes=_vmem_limit_bytes(bt, N, tk, D, d_group, x.dtype,
                                               bias_dtype, matmul_dtype, plist)),
        cost_estimate=_cost_estimate(B, N, D, F, d_group, bias_dtype, x.dtype),
    )(x, pa, pm, *plist)


def encoder_layer_reference(x, pos_add, pos_mult, params, *, d_group):
    """Pure-JAX reference with identical math (sanity check)."""
    B, N, D = x.shape
    n_heads = D // d_group
    scale = 1.0 / float(d_group) ** 0.5

    q = x @ params["wq"] + params["bq"]
    k = x @ params["wk"] + params["bk"]
    v = x @ params["wv"] + params["bv"]

    def heads(t):  # (B,N,D) -> (B,H,N,dg)
        return t.reshape(B, N, n_heads, d_group).transpose(0, 2, 1, 3)

    qh, kh, vh = heads(q), heads(k), heads(v)
    s = jnp.einsum("bhnd,bhmd->bhnm", qh, kh) * scale
    s = s * pos_mult[:, None] + pos_add[:, None]
    p = jax.nn.softmax(s, axis=-1)
    attn = jnp.einsum("bhnm,bhmd->bhnd", p, vh).transpose(0, 2, 1, 3).reshape(B, N, D)
    sa_out = attn @ params["wo"] + params["bo"]

    y = _layer_norm(sa_out + x, params["g1"], params["be1"])
    h1 = jnp.maximum(y @ params["wf1"] + params["bf1"], 0.0)
    ff = h1 @ params["wf2"] + params["bf2"]
    return _layer_norm(ff + y, params["g2"], params["be2"])


if __name__ == "__main__":
    B, N, D_ATT, D_GROUP, FF_WIDTH = 2, 16, 32, 8, 32

    key = jax.random.PRNGKey(0)
    keys = jax.random.split(key, 16)

    def init(k, shape, s=0.1):
        return jax.random.normal(k, shape, jnp.float32) * s

    params = {
        "wq": init(keys[0], (D_ATT, D_ATT)), "bq": init(keys[1], (1, D_ATT)),
        "wk": init(keys[2], (D_ATT, D_ATT)), "bk": init(keys[3], (1, D_ATT)),
        "wv": init(keys[4], (D_ATT, D_ATT)), "bv": init(keys[5], (1, D_ATT)),
        "wo": init(keys[6], (D_ATT, D_ATT)), "bo": init(keys[7], (1, D_ATT)),
        "g1": jnp.ones((1, D_ATT), jnp.float32), "be1": jnp.zeros((1, D_ATT), jnp.float32),
        "g2": jnp.ones((1, D_ATT), jnp.float32), "be2": jnp.zeros((1, D_ATT), jnp.float32),
        "wf1": init(keys[8], (D_ATT, FF_WIDTH)), "bf1": init(keys[9], (1, FF_WIDTH)),
        "wf2": init(keys[10], (FF_WIDTH, D_ATT)), "bf2": init(keys[11], (1, D_ATT)),
    }

    x = jax.random.normal(keys[12], (B, N, D_ATT), jnp.float32)
    pos_add = init(keys[13], (B, N, N), 0.1)
    pos_mult = 1.0 + init(keys[14], (B, N, N), 0.1)

    ref = encoder_layer_reference(x, pos_add, pos_mult, params, d_group=D_GROUP)

    # 1) Parity configuration: f32 matmuls / f32 biases / exact softmax reciprocal.
    out_f32 = encoder_layer_forward(x, pos_add, pos_mult, params, d_group=D_GROUP,
                                    matmul_dtype=jnp.float32, bias_dtype=jnp.float32,
                                    approx_recip=False)
    out_f32 = jax.block_until_ready(out_f32)
    assert out_f32.shape == (B, N, D_ATT)
    assert bool(jnp.all(jnp.isfinite(out_f32)))
    assert bool(jnp.allclose(out_f32, ref, atol=2e-2, rtol=2e-2)), \
        float(jnp.max(jnp.abs(out_f32 - ref)))

    # 2) Default performance configuration: bf16 matmuls + bf16 biases + approx recip
    #    (f32 accumulation, f32 LayerNorm/softmax).
    out_bf16 = encoder_layer_forward(x, pos_add, pos_mult, params, d_group=D_GROUP)
    out_bf16 = jax.block_until_ready(out_bf16)
    assert out_bf16.shape == (B, N, D_ATT)
    assert bool(jnp.all(jnp.isfinite(out_bf16)))
    assert bool(jnp.allclose(out_bf16, ref, atol=7e-2, rtol=7e-2)), \
        float(jnp.max(jnp.abs(out_bf16 - ref)))

    print("KERNEL_OK")
</pallas_src>

<mosaic_0001>
module attributes {stable_mosaic.version = 11 : i64} {
  func.func @kernel(%arg0: i32, %arg1: i32, %arg2: memref<1x16x32xf32, #tpu.memory_space<vmem>>, %arg3: memref<1x16x16xf32, #tpu.memory_space<vmem>>, %arg4: memref<1x16x16xf32, #tpu.memory_space<vmem>>, %arg5: memref<32x96xf32, #tpu.memory_space<vmem>>, %arg6: memref<1x96xf32, #tpu.memory_space<vmem>>, %arg7: memref<32x32xf32, #tpu.memory_space<vmem>>, %arg8: memref<32x32xf32, #tpu.memory_space<vmem>>, %arg9: memref<1x32xf32, #tpu.memory_space<vmem>>, %arg10: memref<32x32xf32, #tpu.memory_space<vmem>>, %arg11: memref<6x32xf32, #tpu.memory_space<vmem>>, %arg12: memref<1x16x32xf32, #tpu.memory_space<vmem>>, %arg13: memref<1x4x16x8xf32, #tpu.memory_space<vmem>>, %arg14: memref<1x4x16x8xf32, #tpu.memory_space<vmem>>, %arg15: memref<1x4x16x8xf32, #tpu.memory_space<vmem>>, %arg16: memref<4x16x1xf32, #tpu.memory_space<vmem>>, %arg17: memref<4x16x1xf32, #tpu.memory_space<vmem>>, %arg18: memref<4x16x8xf32, #tpu.memory_space<vmem>>, %arg19: memref<1x16x32xf32, #tpu.memory_space<vmem>>) attributes {dimension_semantics = [#tpu.dimension_semantics<parallel>, #tpu.dimension_semantics<arbitrary>], iteration_bounds = array<i64: 2, 1>, scalar_prefetch = 0 : i64, scratch_operands = 7 : i64, tpu.core_type = #tpu.core_type<tc>, window_params = [{transform_indices = @transform_0, window_bounds = array<i64: 1, 16, 32>}, {transform_indices = @transform_1, window_bounds = array<i64: 1, 16, 16>}, {transform_indices = @transform_2, window_bounds = array<i64: 1, 16, 16>}, {pipeline_mode = #tpu.pipeline_mode<synchronous>, transform_indices = @transform_3, window_bounds = array<i64: 32, 96>}, {pipeline_mode = #tpu.pipeline_mode<synchronous>, transform_indices = @transform_4, window_bounds = array<i64: 1, 96>}, {pipeline_mode = #tpu.pipeline_mode<synchronous>, transform_indices = @transform_5, window_bounds = array<i64: 32, 32>}, {pipeline_mode = #tpu.pipeline_mode<synchronous>, transform_indices = @transform_6, window_bounds = array<i64: 32, 32>}, {pipeline_mode = #tpu.pipeline_mode<synchronous>, transform_indices = @transform_7, window_bounds = array<i64: 1, 32>}, {pipeline_mode = #tpu.pipeline_mode<synchronous>, transform_indices = @transform_8, window_bounds = array<i64: 32, 32>}, {pipeline_mode = #tpu.pipeline_mode<synchronous>, transform_indices = @transform_9, window_bounds = array<i64: 6, 32>}, {transform_indices = @transform_10, window_bounds = array<i64: 1, 16, 32>}]} {
    %c0_i32 = arith.constant 0 : i32
    %0 = arith.cmpi eq, %arg1, %c0_i32 : i32
    %1 = arith.extui %0 : i1 to i32
    %c0_i32_0 = arith.constant 0 : i32
    %2 = arith.cmpi ne, %1, %c0_i32_0 : i32
    scf.if %2 {
      %c0_40 = arith.constant 0 : index
      %c0_41 = arith.constant 0 : index
      %c0_42 = arith.constant 0 : index
      %51 = vector.load %arg2[%c0_40, %c0_41, %c0_42] : memref<1x16x32xf32, #tpu.memory_space<vmem>>, vector<1x16x32xf32>
      %52 = vector.shape_cast %51 : vector<1x16x32xf32> to vector<16x32xf32>
      %c0_43 = arith.constant 0 : index
      %c0_44 = arith.constant 0 : index
      %53 = vector.load %arg5[%c0_43, %c0_44] : memref<32x96xf32, #tpu.memory_space<vmem>>, vector<32x96xf32>
      %cst_45 = arith.constant dense<0.000000e+00> : vector<16x96xf32>
      %54 = tpu.matmul %52, %53, %cst_45 {dimension_numbers = #tpu.dot_dimension_numbers<[1], [0], [0], [1], [0, 0, 1, 1], [], []>} : vector<16x32xf32>, vector<32x96xf32>, vector<16x96xf32> -> vector<16x96xf32>
      %c0_46 = arith.constant 0 : index
      %c0_47 = arith.constant 0 : index
      %55 = vector.load %arg6[%c0_46, %c0_47] : memref<1x96xf32, #tpu.memory_space<vmem>>, vector<1x96xf32>
      %56 = vector.broadcast %55 : vector<1x96xf32> to vector<16x96xf32>
      %57 = arith.addf %54, %56 : vector<16x96xf32>
      %58 = vector.extract_strided_slice %57 {offsets = [0, 0], sizes = [16, 8], strides = [1, 1]} : vector<16x96xf32> to vector<16x8xf32>
      %59 = vector.shape_cast %58 : vector<16x8xf32> to vector<1x16x8xf32>
      %c0_48 = arith.constant 0 : index
      %c0_49 = arith.constant 0 : index
      %c0_50 = arith.constant 0 : index
      %c0_51 = arith.constant 0 : index
      %60 = vector.load %arg13[%c0_48, %c0_49, %c0_50, %c0_51] : memref<1x4x16x8xf32, #tpu.memory_space<vmem>>, vector<1x1x16x8xf32>
      %61 = vector.shape_cast %60 : vector<1x1x16x8xf32> to vector<1x16x8xf32>
      %62 = vector.shape_cast %59 : vector<1x16x8xf32> to vector<1x1x16x8xf32>
      tpu.vector_store %arg13[%c0_48, %c0_49, %c0_50, %c0_51], %62 {strides = array<i32>} : memref<1x4x16x8xf32, #tpu.memory_space<vmem>>, vector<1x1x16x8xf32>,
      %63 = vector.extract_strided_slice %57 {offsets = [0, 32], sizes = [16, 8], strides = [1, 1]} : vector<16x96xf32> to vector<16x8xf32>
      %64 = vector.shape_cast %63 : vector<16x8xf32> to vector<1x16x8xf32>
      %c0_52 = arith.constant 0 : index
      %c0_53 = arith.constant 0 : index
      %c0_54 = arith.constant 0 : index
      %c0_55 = arith.constant 0 : index
      %65 = vector.load %arg14[%c0_52, %c0_53, %c0_54, %c0_55] : memref<1x4x16x8xf32, #tpu.memory_space<vmem>>, vector<1x1x16x8xf32>
      %66 = vector.shape_cast %65 : vector<1x1x16x8xf32> to vector<1x16x8xf32>
      %67 = vector.shape_cast %64 : vector<1x16x8xf32> to vector<1x1x16x8xf32>
      tpu.vector_store %arg14[%c0_52, %c0_53, %c0_54, %c0_55], %67 {strides = array<i32>} : memref<1x4x16x8xf32, #tpu.memory_space<vmem>>, vector<1x1x16x8xf32>,
      %68 = vector.extract_strided_slice %57 {offsets = [0, 64], sizes = [16, 8], strides = [1, 1]} : vector<16x96xf32> to vector<16x8xf32>
      %69 = vector.shape_cast %68 : vector<16x8xf32> to vector<1x16x8xf32>
      %c0_56 = arith.constant 0 : index
      %c0_57 = arith.constant 0 : index
      %c0_58 = arith.constant 0 : index
      %c0_59 = arith.constant 0 : index
      %70 = vector.load %arg15[%c0_56, %c0_57, %c0_58, %c0_59] : memref<1x4x16x8xf32, #tpu.memory_space<vmem>>, vector<1x1x16x8xf32>
      %71 = vector.shape_cast %70 : vector<1x1x16x8xf32> to vector<1x16x8xf32>
      %72 = vector.shape_cast %69 : vector<1x16x8xf32> to vector<1x1x16x8xf32>
      tpu.vector_store %arg15[%c0_56, %c0_57, %c0_58, %c0_59], %72 {strides = array<i32>} : memref<1x4x16x8xf32, #tpu.memory_space<vmem>>, vector<1x1x16x8xf32>,
      %73 = vector.extract_strided_slice %57 {offsets = [0, 8], sizes = [16, 8], strides = [1, 1]} : vector<16x96xf32> to vector<16x8xf32>
      %74 = vector.shape_cast %73 : vector<16x8xf32> to vector<1x16x8xf32>
      %c0_60 = arith.constant 0 : index
      %c1 = arith.constant 1 : index
      %c0_61 = arith.constant 0 : index
      %c0_62 = arith.constant 0 : index
      %75 = vector.load %arg13[%c0_60, %c1, %c0_61, %c0_62] : memref<1x4x16x8xf32, #tpu.memory_space<vmem>>, vector<1x1x16x8xf32>
      %76 = vector.shape_cast %75 : vector<1x1x16x8xf32> to vector<1x16x8xf32>
      %77 = vector.shape_cast %74 : vector<1x16x8xf32> to vector<1x1x16x8xf32>
      tpu.vector_store %arg13[%c0_60, %c1, %c0_61, %c0_62], %77 {strides = array<i32>} : memref<1x4x16x8xf32, #tpu.memory_space<vmem>>, vector<1x1x16x8xf32>,
      %78 = vector.extract_strided_slice %57 {offsets = [0, 40], sizes = [16, 8], strides = [1, 1]} : vector<16x96xf32> to vector<16x8xf32>
      %79 = vector.shape_cast %78 : vector<16x8xf32> to vector<1x16x8xf32>
      %c0_63 = arith.constant 0 : index
      %c1_64 = arith.constant 1 : index
      %c0_65 = arith.constant 0 : index
      %c0_66 = arith.constant 0 : index
      %80 = vector.load %arg14[%c0_63, %c1_64, %c0_65, %c0_66] : memref<1x4x16x8xf32, #tpu.memory_space<vmem>>, vector<1x1x16x8xf32>
      %81 = vector.shape_cast %80 : vector<1x1x16x8xf32> to vector<1x16x8xf32>
      %82 = vector.shape_cast %79 : vector<1x16x8xf32> to vector<1x1x16x8xf32>
      tpu.vector_store %arg14[%c0_63, %c1_64, %c0_65, %c0_66], %82 {strides = array<i32>} : memref<1x4x16x8xf32, #tpu.memory_space<vmem>>, vector<1x1x16x8xf32>,
      %83 = vector.extract_strided_slice %57 {offsets = [0, 72], sizes = [16, 8], strides = [1, 1]} : vector<16x96xf32> to vector<16x8xf32>
      %84 = vector.shape_cast %83 : vector<16x8xf32> to vector<1x16x8xf32>
      %c0_67 = arith.constant 0 : index
      %c1_68 = arith.constant 1 : index
      %c0_69 = arith.constant 0 : index
      %c0_70 = arith.constant 0 : index
      %85 = vector.load %arg15[%c0_67, %c1_68, %c0_69, %c0_70] : memref<1x4x16x8xf32, #tpu.memory_space<vmem>>, vector<1x1x16x8xf32>
      %86 = vector.shape_cast %85 : vector<1x1x16x8xf32> to vector<1x16x8xf32>
      %87 = vector.shape_cast %84 : vector<1x16x8xf32> to vector<1x1x16x8xf32>
      tpu.vector_store %arg15[%c0_67, %c1_68, %c0_69, %c0_70], %87 {strides = array<i32>} : memref<1x4x16x8xf32, #tpu.memory_space<vmem>>, vector<1x1x16x8xf32>,
      %88 = vector.extract_strided_slice %57 {offsets = [0, 16], sizes = [16, 8], strides = [1, 1]} : vector<16x96xf32> to vector<16x8xf32>
      %89 = vector.shape_cast %88 : vector<16x8xf32> to vector<1x16x8xf32>
      %c0_71 = arith.constant 0 : index
      %c2 = arith.constant 2 : index
      %c0_72 = arith.constant 0 : index
      %c0_73 = arith.constant 0 : index
      %90 = vector.load %arg13[%c0_71, %c2, %c0_72, %c0_73] : memref<1x4x16x8xf32, #tpu.memory_space<vmem>>, vector<1x1x16x8xf32>
      %91 = vector.shape_cast %90 : vector<1x1x16x8xf32> to vector<1x16x8xf32>
      %92 = vector.shape_cast %89 : vector<1x16x8xf32> to vector<1x1x16x8xf32>
      tpu.vector_store %arg13[%c0_71, %c2, %c0_72, %c0_73], %92 {strides = array<i32>} : memref<1x4x16x8xf32, #tpu.memory_space<vmem>>, vector<1x1x16x8xf32>,
      %93 = vector.extract_strided_slice %57 {offsets = [0, 48], sizes = [16, 8], strides = [1, 1]} : vector<16x96xf32> to vector<16x8xf32>
      %94 = vector.shape_cast %93 : vector<16x8xf32> to vector<1x16x8xf32>
      %c0_74 = arith.constant 0 : index
      %c2_75 = arith.constant 2 : index
      %c0_76 = arith.constant 0 : index
      %c0_77 = arith.constant 0 : index
      %95 = vector.load %arg14[%c0_74, %c2_75, %c0_76, %c0_77] : memref<1x4x16x8xf32, #tpu.memory_space<vmem>>, vector<1x1x16x8xf32>
      %96 = vector.shape_cast %95 : vector<1x1x16x8xf32> to vector<1x16x8xf32>
      %97 = vector.shape_cast %94 : vector<1x16x8xf32> to vector<1x1x16x8xf32>
      tpu.vector_store %arg14[%c0_74, %c2_75, %c0_76, %c0_77], %97 {strides = array<i32>} : memref<1x4x16x8xf32, #tpu.memory_space<vmem>>, vector<1x1x16x8xf32>,
      %98 = vector.extract_strided_slice %57 {offsets = [0, 80], sizes = [16, 8], strides = [1, 1]} : vector<16x96xf32> to vector<16x8xf32>
      %99 = vector.shape_cast %98 : vector<16x8xf32> to vector<1x16x8xf32>
      %c0_78 = arith.constant 0 : index
      %c2_79 = arith.constant 2 : index
      %c0_80 = arith.constant 0 : index
      %c0_81 = arith.constant 0 : index
      %100 = vector.load %arg15[%c0_78, %c2_79, %c0_80, %c0_81] : memref<1x4x16x8xf32, #tpu.memory_space<vmem>>, vector<1x1x16x8xf32>
      %101 = vector.shape_cast %100 : vector<1x1x16x8xf32> to vector<1x16x8xf32>
      %102 = vector.shape_cast %99 : vector<1x16x8xf32> to vector<1x1x16x8xf32>
      tpu.vector_store %arg15[%c0_78, %c2_79, %c0_80, %c0_81], %102 {strides = array<i32>} : memref<1x4x16x8xf32, #tpu.memory_space<vmem>>, vector<1x1x16x8xf32>,
      %103 = vector.extract_strided_slice %57 {offsets = [0, 24], sizes = [16, 8], strides = [1, 1]} : vector<16x96xf32> to vector<16x8xf32>
      %104 = vector.shape_cast %103 : vector<16x8xf32> to vector<1x16x8xf32>
      %c0_82 = arith.constant 0 : index
      %c3 = arith.constant 3 : index
      %c0_83 = arith.constant 0 : index
      %c0_84 = arith.constant 0 : index
      %105 = vector.load %arg13[%c0_82, %c3, %c0_83, %c0_84] : memref<1x4x16x8xf32, #tpu.memory_space<vmem>>, vector<1x1x16x8xf32>
      %106 = vector.shape_cast %105 : vector<1x1x16x8xf32> to vector<1x16x8xf32>
      %107 = vector.shape_cast %104 : vector<1x16x8xf32> to vector<1x1x16x8xf32>
      tpu.vector_store %arg13[%c0_82, %c3, %c0_83, %c0_84], %107 {strides = array<i32>} : memref<1x4x16x8xf32, #tpu.memory_space<vmem>>, vector<1x1x16x8xf32>,
      %108 = vector.extract_strided_slice %57 {offsets = [0, 56], sizes = [16, 8], strides = [1, 1]} : vector<16x96xf32> to vector<16x8xf32>
      %109 = vector.shape_cast %108 : vector<16x8xf32> to vector<1x16x8xf32>
      %c0_85 = arith.constant 0 : index
      %c3_86 = arith.constant 3 : index
      %c0_87 = arith.constant 0 : index
      %c0_88 = arith.constant 0 : index
      %110 = vector.load %arg14[%c0_85, %c3_86, %c0_87, %c0_88] : memref<1x4x16x8xf32, #tpu.memory_space<vmem>>, vector<1x1x16x8xf32>
      %111 = vector.shape_cast %110 : vector<1x1x16x8xf32> to vector<1x16x8xf32>
      %112 = vector.shape_cast %109 : vector<1x16x8xf32> to vector<1x1x16x8xf32>
      tpu.vector_store %arg14[%c0_85, %c3_86, %c0_87, %c0_88], %112 {strides = array<i32>} : memref<1x4x16x8xf32, #tpu.memory_space<vmem>>, vector<1x1x16x8xf32>,
      %113 = vector.extract_strided_slice %57 {offsets = [0, 88], sizes = [16, 8], strides = [1, 1]} : vector<16x96xf32> to vector<16x8xf32>
      %114 = vector.shape_cast %113 : vector<16x8xf32> to vector<1x16x8xf32>
      %c0_89 = arith.constant 0 : index
      %c3_90 = arith.constant 3 : index
      %c0_91 = arith.constant 0 : index
      %c0_92 = arith.constant 0 : index
      %115 = vector.load %arg15[%c0_89, %c3_90, %c0_91, %c0_92] : memref<1x4x16x8xf32, #tpu.memory_space<vmem>>, vector<1x1x16x8xf32>
      %116 = vector.shape_cast %115 : vector<1x1x16x8xf32> to vector<1x16x8xf32>
      %117 = vector.shape_cast %114 : vector<1x16x8xf32> to vector<1x1x16x8xf32>
      tpu.vector_store %arg15[%c0_89, %c3_90, %c0_91, %c0_92], %117 {strides = array<i32>} : memref<1x4x16x8xf32, #tpu.memory_space<vmem>>, vector<1x1x16x8xf32>,
      %cst_93 = arith.constant 0xFF800000 : f32
      %118 = vector.broadcast %cst_93 : f32 to vector<4x16x1xf32>
      %c0_94 = arith.constant 0 : index
      %c0_95 = arith.constant 0 : index
      %c0_96 = arith.constant 0 : index
      %119 = vector.load %arg16[%c0_94, %c0_95, %c0_96] : memref<4x16x1xf32, #tpu.memory_space<vmem>>, vector<4x16x1xf32>
      tpu.vector_store %arg16[%c0_94, %c0_95, %c0_96], %118 {strides = array<i32>} : memref<4x16x1xf32, #tpu.memory_space<vmem>>, vector<4x16x1xf32>,
      %cst_97 = arith.constant 0.000000e+00 : f32
      %120 = vector.broadcast %cst_97 : f32 to vector<4x16x1xf32>
      %c0_98 = arith.constant 0 : index
      %c0_99 = arith.constant 0 : index
      %c0_100 = arith.constant 0 : index
      %121 = vector.load %arg17[%c0_98, %c0_99, %c0_100] : memref<4x16x1xf32, #tpu.memory_space<vmem>>, vector<4x16x1xf32>
      tpu.vector_store %arg17[%c0_98, %c0_99, %c0_100], %120 {strides = array<i32>} : memref<4x16x1xf32, #tpu.memory_space<vmem>>, vector<4x16x1xf32>,
      %cst_101 = arith.constant 0.000000e+00 : f32
      %122 = vector.broadcast %cst_101 : f32 to vector<4x16x8xf32>
      %c0_102 = arith.constant 0 : index
      %c0_103 = arith.constant 0 : index
      %c0_104 = arith.constant 0 : index
      %123 = vector.load %arg18[%c0_102, %c0_103, %c0_104] : memref<4x16x8xf32, #tpu.memory_space<vmem>>, vector<4x16x8xf32>
      tpu.vector_store %arg18[%c0_102, %c0_103, %c0_104], %122 {strides = array<i32>} : memref<4x16x8xf32, #tpu.memory_space<vmem>>, vector<4x16x8xf32>,
    } else {
    }
    %c16_i32 = arith.constant 16 : i32
    %3 = arith.muli %arg1, %c16_i32 : i32
    %4 = tpu.assume_multiple %3, 16 : i32
    %c0 = arith.constant 0 : index
    %c0_1 = arith.constant 0 : index
    %c0_2 = arith.constant 0 : index
    %c0_3 = arith.constant 0 : index
    %5 = vector.load %arg13[%c0, %c0_1, %c0_2, %c0_3] : memref<1x4x16x8xf32, #tpu.memory_space<vmem>>, vector<1x4x16x8xf32>
    %6 = vector.shape_cast %5 : vector<1x4x16x8xf32> to vector<4x16x8xf32>
    %c0_4 = arith.constant 0 : index
    %c0_5 = arith.constant 0 : index
    %7 = arith.index_cast %4 : i32 to index
    %c0_6 = arith.constant 0 : index
    %8 = vector.load %arg14[%c0_4, %c0_5, %7, %c0_6] : memref<1x4x16x8xf32, #tpu.memory_space<vmem>>, vector<1x4x16x8xf32>
    %9 = vector.shape_cast %8 : vector<1x4x16x8xf32> to vector<4x16x8xf32>
    %c0_7 = arith.constant 0 : index
    %c0_8 = arith.constant 0 : index
    %10 = arith.index_cast %4 : i32 to index
    %c0_9 = arith.constant 0 : index
    %11 = vector.load %arg15[%c0_7, %c0_8, %10, %c0_9] : memref<1x4x16x8xf32, #tpu.memory_space<vmem>>, vector<1x4x16x8xf32>
    %12 = vector.shape_cast %11 : vector<1x4x16x8xf32> to vector<4x16x8xf32>
    %cst = arith.constant dense<0.000000e+00> : vector<4x16x16xf32>
    %13 = tpu.matmul %6, %9, %cst {dimension_numbers = #tpu.dot_dimension_numbers<[2], [2], [1], [1], [0, 0, 0, 1, 1, 1], [0], [0]>} : vector<4x16x8xf32>, vector<4x16x8xf32>, vector<4x16x16xf32> -> vector<4x16x16xf32>
    %cst_10 = arith.constant 0.353553385 : f32
    %14 = vector.broadcast %cst_10 : f32 to vector<4x16x16xf32>
    %15 = arith.mulf %13, %14 : vector<4x16x16xf32>
    %c0_11 = arith.constant 0 : index
    %c0_12 = arith.constant 0 : index
    %c0_13 = arith.constant 0 : index
    %16 = vector.load %arg3[%c0_11, %c0_12, %c0_13] : memref<1x16x16xf32, #tpu.memory_space<vmem>>, vector<1x16x16xf32>
    %c0_14 = arith.constant 0 : index
    %c0_15 = arith.constant 0 : index
    %c0_16 = arith.constant 0 : index
    %17 = vector.load %arg4[%c0_14, %c0_15, %c0_16] : memref<1x16x16xf32, #tpu.memory_space<vmem>>, vector<1x16x16xf32>
    %18 = vector.shape_cast %15 : vector<4x16x16xf32> to vector<1x4x16x16xf32>
    %19 = vector.shape_cast %17 : vector<1x16x16xf32> to vector<1x1x16x16xf32>
    %20 = vector.broadcast %19 : vector<1x1x16x16xf32> to vector<1x4x16x16xf32>
    %21 = arith.mulf %18, %20 : vector<1x4x16x16xf32>
    %22 = vector.shape_cast %16 : vector<1x16x16xf32> to vector<1x1x16x16xf32>
    %23 = vector.broadcast %22 : vector<1x1x16x16xf32> to vector<1x4x16x16xf32>
    %24 = arith.addf %21, %23 : vector<1x4x16x16xf32>
    %25 = vector.shape_cast %24 : vector<1x4x16x16xf32> to vector<4x16x16xf32>
    %c0_17 = arith.constant 0 : index
    %c0_18 = arith.constant 0 : index
    %c0_19 = arith.constant 0 : index
    %26 = vector.load %arg16[%c0_17, %c0_18, %c0_19] : memref<4x16x1xf32, #tpu.memory_space<vmem>>, vector<4x16x1xf32>
    %cst_20 = arith.constant dense<0xFF800000> : vector<4x16xf32>
    %27 = vector.multi_reduction <maximumf>, %25, %cst_20 [2] : vector<4x16x16xf32> to vector<4x16xf32>
    %28 = vector.shape_cast %27 : vector<4x16xf32> to vector<4x16x1xf32>
    %29 = arith.maximumf %26, %28 : vector<4x16x1xf32>
    %30 = arith.subf %26, %29 : vector<4x16x1xf32>
    %31 = math.exp %30 : vector<4x16x1xf32>
    %32 = vector.broadcast %29 : vector<4x16x1xf32> to vector<4x16x16xf32>
    %33 = arith.subf %25, %32 : vector<4x16x16xf32>
    %34 = math.exp %33 : vector<4x16x16xf32>
    %c0_21 = arith.constant 0 : index
    %c0_22 = arith.constant 0 : index
    %c0_23 = arith.constant 0 : index
    %35 = vector.load %arg17[%c0_21, %c0_22, %c0_23] : memref<4x16x1xf32, #tpu.memory_space<vmem>>, vector<4x16x1xf32>
    %36 = arith.mulf %31, %35 : vector<4x16x1xf32>
    %cst_24 = arith.constant dense<0.000000e+00> : vector<4x16xf32>
    %37 = vector.multi_reduction <add>, %34, %cst_24 [2] : vector<4x16x16xf32> to vector<4x16xf32>
    %38 = vector.shape_cast %37 : vector<4x16xf32> to vector<4x16x1xf32>
    %39 = arith.addf %36, %38 : vector<4x16x1xf32>
    %c0_25 = arith.constant 0 : index
    %c0_26 = arith.constant 0 : index
    %c0_27 = arith.constant 0 : index
    %40 = vector.load %arg17[%c0_25, %c0_26, %c0_27] : memref<4x16x1xf32, #tpu.memory_space<vmem>>, vector<4x16x1xf32>
    tpu.vector_store %arg17[%c0_25, %c0_26, %c0_27], %39 {strides = array<i32>} : memref<4x16x1xf32, #tpu.memory_space<vmem>>, vector<4x16x1xf32>,
    %cst_28 = arith.constant dense<0.000000e+00> : vector<4x16x8xf32>
    %41 = tpu.matmul %34, %12, %cst_28 {dimension_numbers = #tpu.dot_dimension_numbers<[2], [1], [1], [2], [0, 0, 0, 1, 1, 2], [0], [0]>} : vector<4x16x16xf32>, vector<4x16x8xf32>, vector<4x16x8xf32> -> vector<4x16x8xf32>
    %c0_29 = arith.constant 0 : index
    %c0_30 = arith.constant 0 : index
    %c0_31 = arith.constant 0 : index
    %42 = vector.load %arg18[%c0_29, %c0_30, %c0_31] : memref<4x16x8xf32, #tpu.memory_space<vmem>>, vector<4x16x8xf32>
    %43 = vector.broadcast %31 : vector<4x16x1xf32> to vector<4x16x8xf32>
    %44 = arith.mulf %43, %42 : vector<4x16x8xf32>
    %45 = arith.addf %44, %41 : vector<4x16x8xf32>
    %c0_32 = arith.constant 0 : index
    %c0_33 = arith.constant 0 : index
    %c0_34 = arith.constant 0 : index
    %46 = vector.load %arg18[%c0_32, %c0_33, %c0_34] : memref<4x16x8xf32, #tpu.memory_space<vmem>>, vector<4x16x8xf32>
    tpu.vector_store %arg18[%c0_32, %c0_33, %c0_34], %45 {strides = array<i32>} : memref<4x16x8xf32, #tpu.memory_space<vmem>>, vector<4x16x8xf32>,
    %c0_35 = arith.constant 0 : index
    %c0_36 = arith.constant 0 : index
    %c0_37 = arith.constant 0 : index
    %47 = vector.load %arg16[%c0_35, %c0_36, %c0_37] : memref<4x16x1xf32, #tpu.memory_space<vmem>>, vector<4x16x1xf32>
    tpu.vector_store %arg16[%c0_35, %c0_36, %c0_37], %29 {strides = array<i32>} : memref<4x16x1xf32, #tpu.memory_space<vmem>>, vector<4x16x1xf32>,
    %c0_i32_38 = arith.constant 0 : i32
    %48 = arith.cmpi eq, %arg1, %c0_i32_38 : i32
    %49 = arith.extui %48 : i1 to i32
    %c0_i32_39 = arith.constant 0 : i32
    %50 = arith.cmpi ne, %49, %c0_i32_39 : i32
    scf.if %50 {
      %c0_40 = arith.constant 0 : index
      %c0_41 = arith.constant 0 : index
      %51 = vector.load %arg11[%c0_40, %c0_41] : memref<6x32xf32, #tpu.memory_space<vmem>>, vector<1x32xf32>
      %c1 = arith.constant 1 : index
      %c0_42 = arith.constant 0 : index
      %52 = vector.load %arg11[%c1, %c0_42] : memref<6x32xf32, #tpu.memory_space<vmem>>, vector<1x32xf32>
      %c2 = arith.constant 2 : index
      %c0_43 = arith.constant 0 : index
      %53 = vector.load %arg11[%c2, %c0_43] : memref<6x32xf32, #tpu.memory_space<vmem>>, vector<1x32xf32>
      %c3 = arith.constant 3 : index
      %c0_44 = arith.constant 0 : index
      %54 = vector.load %arg11[%c3, %c0_44] : memref<6x32xf32, #tpu.memory_space<vmem>>, vector<1x32xf32>
      %c4 = arith.constant 4 : index
      %c0_45 = arith.constant 0 : index
      %55 = vector.load %arg11[%c4, %c0_45] : memref<6x32xf32, #tpu.memory_space<vmem>>, vector<1x32xf32>
      %c5 = arith.constant 5 : index
      %c0_46 = arith.constant 0 : index
      %56 = vector.load %arg11[%c5, %c0_46] : memref<6x32xf32, #tpu.memory_space<vmem>>, vector<1x32xf32>
      %c0_47 = arith.constant 0 : index
      %c0_48 = arith.constant 0 : index
      %c0_49 = arith.constant 0 : index
      %57 = vector.load %arg17[%c0_47, %c0_48, %c0_49] : memref<4x16x1xf32, #tpu.memory_space<vmem>>, vector<4x16x1xf32>
      %cst_50 = arith.constant 1.000000e+00 : f32
      %58 = vector.broadcast %cst_50 : f32 to vector<4x16x1xf32>
      %59 = arith.divf %58, %57 : vector<4x16x1xf32>
      %c0_51 = arith.constant 0 : index
      %c0_52 = arith.constant 0 : index
      %c0_53 = arith.constant 0 : index
      %60 = vector.load %arg18[%c0_51, %c0_52, %c0_53] : memref<4x16x8xf32, #tpu.memory_space<vmem>>, vector<4x16x8xf32>
      %61 = vector.broadcast %59 : vector<4x16x1xf32> to vector<4x16x8xf32>
      %62 = arith.mulf %60, %61 : vector<4x16x8xf32>
      %63 = vector.shape_cast %62 : vector<4x16x8xf32> to vector<1x4x16x8xf32>
      %64 = vector.extract_strided_slice %63 {offsets = [0, 0, 0, 0], sizes = [1, 1, 16, 8], strides = [1, 1, 1, 1]} : vector<1x4x16x8xf32> to vector<1x1x16x8xf32>
      %65 = vector.shape_cast %64 : vector<1x1x16x8xf32> to vector<1x16x8xf32>
      %c0_54 = arith.constant 0 : index
      %c0_55 = arith.constant 0 : index
      %c0_56 = arith.constant 0 : index
      %66 = vector.load %arg19[%c0_54, %c0_55, %c0_56] : memref<1x16x32xf32, #tpu.memory_space<vmem>>, vector<1x16x8xf32>
      tpu.vector_store %arg19[%c0_54, %c0_55, %c0_56], %65 {strides = array<i32>} : memref<1x16x32xf32, #tpu.memory_space<vmem>>, vector<1x16x8xf32>,
      %67 = vector.extract_strided_slice %63 {offsets = [0, 1, 0, 0], sizes = [1, 1, 16, 8], strides = [1, 1, 1, 1]} : vector<1x4x16x8xf32> to vector<1x1x16x8xf32>
      %68 = vector.shape_cast %67 : vector<1x1x16x8xf32> to vector<1x16x8xf32>
      %c0_57 = arith.constant 0 : index
      %c0_58 = arith.constant 0 : index
      %c8 = arith.constant 8 : index
      %69 = vector.load %arg19[%c0_57, %c0_58, %c8] : memref<1x16x32xf32, #tpu.memory_space<vmem>>, vector<1x16x8xf32>
      tpu.vector_store %arg19[%c0_57, %c0_58, %c8], %68 {strides = array<i32>} : memref<1x16x32xf32, #tpu.memory_space<vmem>>, vector<1x16x8xf32>,
      %70 = vector.extract_strided_slice %63 {offsets = [0, 2, 0, 0], sizes = [1, 1, 16, 8], strides = [1, 1, 1, 1]} : vector<1x4x16x8xf32> to vector<1x1x16x8xf32>
      %71 = vector.shape_cast %70 : vector<1x1x16x8xf32> to vector<1x16x8xf32>
      %c0_59 = arith.constant 0 : index
      %c0_60 = arith.constant 0 : index
      %c16 = arith.constant 16 : index
      %72 = vector.load %arg19[%c0_59, %c0_60, %c16] : memref<1x16x32xf32, #tpu.memory_space<vmem>>, vector<1x16x8xf32>
      tpu.vector_store %arg19[%c0_59, %c0_60, %c16], %71 {strides = array<i32>} : memref<1x16x32xf32, #tpu.memory_space<vmem>>, vector<1x16x8xf32>,
      %73 = vector.extract_strided_slice %63 {offsets = [0, 3, 0, 0], sizes = [1, 1, 16, 8], strides = [1, 1, 1, 1]} : vector<1x4x16x8xf32> to vector<1x1x16x8xf32>
      %74 = vector.shape_cast %73 : vector<1x1x16x8xf32> to vector<1x16x8xf32>
      %c0_61 = arith.constant 0 : index
      %c0_62 = arith.constant 0 : index
      %c24 = arith.constant 24 : index
      %75 = vector.load %arg19[%c0_61, %c0_62, %c24] : memref<1x16x32xf32, #tpu.memory_space<vmem>>, vector<1x16x8xf32>
      tpu.vector_store %arg19[%c0_61, %c0_62, %c24], %74 {strides = array<i32>} : memref<1x16x32xf32, #tpu.memory_space<vmem>>, vector<1x16x8xf32>,
      %c0_63 = arith.constant 0 : index
      %c0_64 = arith.constant 0 : index
      %c0_65 = arith.constant 0 : index
      %76 = vector.load %arg2[%c0_63, %c0_64, %c0_65] : memref<1x16x32xf32, #tpu.memory_space<vmem>>, vector<1x16x32xf32>
      %77 = vector.shape_cast %76 : vector<1x16x32xf32> to vector<16x32xf32>
      %c0_66 = arith.constant 0 : index
      %c0_67 = arith.constant 0 : index
      %c0_68 = arith.constant 0 : index
      %78 = vector.load %arg19[%c0_66, %c0_67, %c0_68] : memref<1x16x32xf32, #tpu.memory_space<vmem>>, vector<1x16x32xf32>
      %79 = vector.shape_cast %78 : vector<1x16x32xf32> to vector<16x32xf32>
      %c0_69 = arith.constant 0 : index
      %c0_70 = arith.constant 0 : index
      %80 = vector.load %arg7[%c0_69, %c0_70] : memref<32x32xf32, #tpu.memory_space<vmem>>, vector<32x32xf32>
      %cst_71 = arith.constant dense<0.000000e+00> : vector<16x32xf32>
      %81 = tpu.matmul %79, %80, %cst_71 {dimension_numbers = #tpu.dot_dimension_numbers<[1], [0], [0], [1], [0, 0, 1, 1], [], []>} : vector<16x32xf32>, vector<32x32xf32>, vector<16x32xf32> -> vector<16x32xf32>
      %82 = vector.broadcast %51 : vector<1x32xf32> to vector<16x32xf32>
      %83 = arith.addf %81, %82 : vector<16x32xf32>
      %84 = arith.addf %83, %77 : vector<16x32xf32>
      %cst_72 = arith.constant dense<0.000000e+00> : vector<16xf32>
      %85 = vector.multi_reduction <add>, %84, %cst_72 [1] : vector<16x32xf32> to vector<16xf32>
      %86 = vector.shape_cast %85 : vector<16xf32> to vector<16x1xf32>
      %cst_73 = arith.constant 3.200000e+01 : f32
      %87 = vector.broadcast %cst_73 : f32 to vector<16x1xf32>
      %88 = arith.divf %86, %87 : vector<16x1xf32>
      %89 = vector.broadcast %88 : vector<16x1xf32> to vector<16x32xf32>
      %90 = arith.subf %84, %89 : vector<16x32xf32>
      %91 = arith.mulf %90, %90 : vector<16x32xf32>
      %cst_74 = arith.constant dense<0.000000e+00> : vector<16xf32>
      %92 = vector.multi_reduction <add>, %91, %cst_74 [1] : vector<16x32xf32> to vector<16xf32>
      %93 = vector.shape_cast %92 : vector<16xf32> to vector<16x1xf32>
      %cst_75 = arith.constant 3.200000e+01 : f32
      %94 = vector.broadcast %cst_75 : f32 to vector<16x1xf32>
      %95 = arith.divf %93, %94 : vector<16x1xf32>
      %96 = vector.broadcast %88 : vector<16x1xf32> to vector<16x32xf32>
      %97 = arith.subf %84, %96 : vector<16x32xf32>
      %cst_76 = arith.constant 9.99999974E-6 : f32
      %98 = vector.broadcast %cst_76 : f32 to vector<16x1xf32>
      %99 = arith.addf %95, %98 : vector<16x1xf32>
      %100 = math.rsqrt %99 : vector<16x1xf32>
      %101 = vector.broadcast %100 : vector<16x1xf32> to vector<16x32xf32>
      %102 = arith.mulf %97, %101 : vector<16x32xf32>
      %103 = vector.broadcast %52 : vector<1x32xf32> to vector<16x32xf32>
      %104 = arith.mulf %102, %103 : vector<16x32xf32>
      %105 = vector.broadcast %53 : vector<1x32xf32> to vector<16x32xf32>
      %106 = arith.addf %104, %105 : vector<16x32xf32>
      %c0_77 = arith.constant 0 : index
      %c0_78 = arith.constant 0 : index
      %107 = vector.load %arg8[%c0_77, %c0_78] : memref<32x32xf32, #tpu.memory_space<vmem>>, vector<32x32xf32>
      %cst_79 = arith.constant dense<0.000000e+00> : vector<16x32xf32>
      %108 = tpu.matmul %106, %107, %cst_79 {dimension_numbers = #tpu.dot_dimension_numbers<[1], [0], [0], [1], [0, 0, 1, 1], [], []>} : vector<16x32xf32>, vector<32x32xf32>, vector<16x32xf32> -> vector<16x32xf32>
      %c0_80 = arith.constant 0 : index
      %c0_81 = arith.constant 0 : index
      %109 = vector.load %arg9[%c0_80, %c0_81] : memref<1x32xf32, #tpu.memory_space<vmem>>, vector<1x32xf32>
      %110 = vector.broadcast %109 : vector<1x32xf32> to vector<16x32xf32>
      %111 = arith.addf %108, %110 : vector<16x32xf32>
      %cst_82 = arith.constant 0.000000e+00 : f32
      %112 = vector.broadcast %cst_82 : f32 to vector<16x32xf32>
      %113 = arith.maximumf %111, %112 : vector<16x32xf32>
      %c0_83 = arith.constant 0 : index
      %c0_84 = arith.constant 0 : index
      %114 = vector.load %arg10[%c0_83, %c0_84] : memref<32x32xf32, #tpu.memory_space<vmem>>, vector<32x32xf32>
      %cst_85 = arith.constant dense<0.000000e+00> : vector<16x32xf32>
      %115 = tpu.matmul %113, %114, %cst_85 {dimension_numbers = #tpu.dot_dimension_numbers<[1], [0], [0], [1], [0, 0, 1, 1], [], []>} : vector<16x32xf32>, vector<32x32xf32>, vector<16x32xf32> -> vector<16x32xf32>
      %116 = vector.broadcast %56 : vector<1x32xf32> to vector<16x32xf32>
      %117 = arith.addf %115, %116 : vector<16x32xf32>
      %118 = arith.addf %117, %106 : vector<16x32xf32>
      %cst_86 = arith.constant dense<0.000000e+00> : vector<16xf32>
      %119 = vector.multi_reduction <add>, %118, %cst_86 [1] : vector<16x32xf32> to vector<16xf32>
      %120 = vector.shape_cast %119 : vector<16xf32> to vector<16x1xf32>
      %cst_87 = arith.constant 3.200000e+01 : f32
      %121 = vector.broadcast %cst_87 : f32 to vector<16x1xf32>
      %122 = arith.divf %120, %121 : vector<16x1xf32>
      %123 = vector.broadcast %122 : vector<16x1xf32> to vector<16x32xf32>
      %124 = arith.subf %118, %123 : vector<16x32xf32>
      %125 = arith.mulf %124, %124 : vector<16x32xf32>
      %cst_88 = arith.constant dense<0.000000e+00> : vector<16xf32>
      %126 = vector.multi_reduction <add>, %125, %cst_88 [1] : vector<16x32xf32> to vector<16xf32>
      %127 = vector.shape_cast %126 : vector<16xf32> to vector<16x1xf32>
      %cst_89 = arith.constant 3.200000e+01 : f32
      %128 = vector.broadcast %cst_89 : f32 to vector<16x1xf32>
      %129 = arith.divf %127, %128 : vector<16x1xf32>
      %130 = vector.broadcast %122 : vector<16x1xf32> to vector<16x32xf32>
      %131 = arith.subf %118, %130 : vector<16x32xf32>
      %cst_90 = arith.constant 9.99999974E-6 : f32
      %132 = vector.broadcast %cst_90 : f32 to vector<16x1xf32>
      %133 = arith.addf %129, %132 : vector<16x1xf32>
      %134 = math.rsqrt %133 : vector<16x1xf32>
      %135 = vector.broadcast %134 : vector<16x1xf32> to vector<16x32xf32>
      %136 = arith.mulf %131, %135 : vector<16x32xf32>
      %137 = vector.broadcast %54 : vector<1x32xf32> to vector<16x32xf32>
      %138 = arith.mulf %136, %137 : vector<16x32xf32>
      %139 = vector.broadcast %55 : vector<1x32xf32> to vector<16x32xf32>
      %140 = arith.addf %138, %139 : vector<16x32xf32>
      %141 = vector.shape_cast %140 : vector<16x32xf32> to vector<1x16x32xf32>
      %c0_91 = arith.constant 0 : index
      %c0_92 = arith.constant 0 : index
      %c0_93 = arith.constant 0 : index
      %142 = vector.load %arg12[%c0_91, %c0_92, %c0_93] : memref<1x16x32xf32, #tpu.memory_space<vmem>>, vector<1x16x32xf32>
      tpu.vector_store %arg12[%c0_91, %c0_92, %c0_93], %141 {strides = array<i32>} : memref<1x16x32xf32, #tpu.memory_space<vmem>>, vector<1x16x32xf32>,
    } else {
    }
    return
  }
  func.func @transform_0(%arg0: i32, %arg1: i32) -> (i32, i32, i32) {
    %c0_i32 = arith.constant 0 : i32
    %c0_i32_0 = arith.constant 0 : i32
    %c0_i32_1 = arith.constant 0 : i32
    return %arg0, %c0_i32, %c0_i32_0 : i32, i32, i32
  }
  func.func @transform_1(%arg0: i32, %arg1: i32) -> (i32, i32, i32) {
    %c0_i32 = arith.constant 0 : i32
    %c0_i32_0 = arith.constant 0 : i32
    return %arg0, %c0_i32, %arg1 : i32, i32, i32
  }
  func.func @transform_2(%arg0: i32, %arg1: i32) -> (i32, i32, i32) {
    %c0_i32 = arith.constant 0 : i32
    %c0_i32_0 = arith.constant 0 : i32
    return %arg0, %c0_i32, %arg1 : i32, i32, i32
  }
  func.func @transform_3(%arg0: i32, %arg1: i32) -> (i32, i32) {
    %c0_i32 = arith.constant 0 : i32
    %c0_i32_0 = arith.constant 0 : i32
    %c0_i32_1 = arith.constant 0 : i32
    return %c0_i32, %c0_i32_0 : i32, i32
  }
  func.func @transform_4(%arg0: i32, %arg1: i32) -> (i32, i32) {
    %c0_i32 = arith.constant 0 : i32
    %c0_i32_0 = arith.constant 0 : i32
    %c0_i32_1 = arith.constant 0 : i32
    return %c0_i32, %c0_i32_0 : i32, i32
  }
  func.func @transform_5(%arg0: i32, %arg1: i32) -> (i32, i32) {
    %c0_i32 = arith.constant 0 : i32
    %c0_i32_0 = arith.constant 0 : i32
    %c0_i32_1 = arith.constant 0 : i32
    return %c0_i32, %c0_i32_0 : i32, i32
  }
  func.func @transform_6(%arg0: i32, %arg1: i32) -> (i32, i32) {
    %c0_i32 = arith.constant 0 : i32
    %c0_i32_0 = arith.constant 0 : i32
    %c0_i32_1 = arith.constant 0 : i32
    return %c0_i32, %c0_i32_0 : i32, i32
  }
  func.func @transform_7(%arg0: i32, %arg1: i32) -> (i32, i32) {
    %c0_i32 = arith.constant 0 : i32
    %c0_i32_0 = arith.constant 0 : i32
    %c0_i32_1 = arith.constant 0 : i32
    return %c0_i32, %c0_i32_0 : i32, i32
  }
  func.func @transform_8(%arg0: i32, %arg1: i32) -> (i32, i32) {
    %c0_i32 = arith.constant 0 : i32
    %c0_i32_0 = arith.constant 0 : i32
    %c0_i32_1 = arith.constant 0 : i32
    return %c0_i32, %c0_i32_0 : i32, i32
  }
  func.func @transform_9(%arg0: i32, %arg1: i32) -> (i32, i32) {
    %c0_i32 = arith.constant 0 : i32
    %c0_i32_0 = arith.constant 0 : i32
    %c0_i32_1 = arith.constant 0 : i32
    return %c0_i32, %c0_i32_0 : i32, i32
  }
  func.func @transform_10(%arg0: i32, %arg1: i32) -> (i32, i32, i32) {
    %c0_i32 = arith.constant 0 : i32
    %c0_i32_0 = arith.constant 0 : i32
    %c0_i32_1 = arith.constant 0 : i32
    return %arg0, %c0_i32, %c0_i32_0 : i32, i32, i32
  }
}

</mosaic_0001>

<llo_original>
// kernel: encoder_layer_forward.1
$region0: #{encoder_layer_forward.1}
  #allocation0 [shape = 'u32[]', space=smem, size = 0x4, offset = 0x4, fixed_abs, tag = 'smem constant byte address 0x4 - core index']
  #allocation1 [shape = 'u32[144,128]{1,0:T(1,128)}', space=vmem, size = 0x12000, scoped, tag = 'internal scratch']
  #allocation2 [shape = 'f32[1,4,16,8]{3,2,1,0:T(8,128)}', space=vmem, size = 0x8000, scoped, tag = 'scratch operand']
  #allocation3 [shape = 'f32[1,4,16,8]{3,2,1,0:T(8,128)}', space=vmem, size = 0x8000, scoped, tag = 'scratch operand']
  #allocation4 [shape = 'f32[1,4,16,8]{3,2,1,0:T(8,128)}', space=vmem, size = 0x8000, scoped, tag = 'scratch operand']
  #allocation5 [shape = 'f32[4,16,1]{2,1,0:T(8,128)}', space=vmem, size = 0x8000, scoped, tag = 'scratch operand']
  #allocation6 [shape = 'f32[4,16,1]{2,1,0:T(8,128)}', space=vmem, size = 0x8000, scoped, tag = 'scratch operand']
  #allocation7 [shape = 'f32[4,16,8]{2,1,0:T(8,128)}', space=vmem, size = 0x8000, scoped, tag = 'scratch operand']
  #allocation8 [shape = 'f32[1,16,32]{2,1,0:T(8,128)}', space=vmem, size = 0x2000, scoped, tag = 'scratch operand']
  %s0 = inlined_call_operand.vmem [shape: f32[2,16,32], index: 0, kind: input, shape index: {}]
  %s1 = inlined_call_operand.vmem [shape: f32[2,16,16], index: 1, kind: input, shape index: {}]
  %s2 = inlined_call_operand.vmem [shape: f32[2,16,16], index: 2, kind: input, shape index: {}]
  %s3 = inlined_call_operand.vmem [shape: f32[32,96], index: 3, kind: input, shape index: {}]
  %s4 = inlined_call_operand.vmem [shape: f32[1,96], index: 4, kind: input, shape index: {}]
  %s5 = inlined_call_operand.vmem [shape: f32[32,32], index: 5, kind: input, shape index: {}]
  %s6 = inlined_call_operand.hbm [shape: f32[32,32], index: 6, kind: input, shape index: {}]
  %s7 = inlined_call_operand.vmem [shape: f32[1,32], index: 7, kind: input, shape index: {}]
  %s8 = inlined_call_operand.hbm [shape: f32[32,32], index: 8, kind: input, shape index: {}]
  %s9 = inlined_call_operand.vmem [shape: f32[6,32], index: 9, kind: input, shape index: {}]
  %s10 = inlined_call_operand.hbm [shape: f32[2,16,32], index: 10, kind: output, shape index: {}]
  %s11 = sld [smem:[#allocation0]]
  $region89: #{encoder_layer_forward.1} parent=0
    _
  %s13 = ssub.s32 1, %s11
  %s14 = scalar_select 0, %s13, %s11
  $region1: #{encoder_layer_forward.1} parent=0
    #allocation9 [shape = 'u8[16384]{0}', space=vmem, size = 0x4000, scoped, tag = 'input window, operand 6, single buffered']
    #allocation10 [shape = 's32[2]{0}', space=sflag, size = 0x8, scoped, tag = 'scoped memory for encoder_layer_forward.1']
    #allocation11 [shape = 's32[2]{0}', space=sflag, size = 0x8, scoped, tag = 'scoped memory for encoder_layer_forward.1']
    #allocation12 [shape = 'u8[16384]{0}', space=vmem, size = 0x4000, scoped, tag = 'input window, operand 8, single buffered']
    #allocation13 [shape = 's32[1]{0}', space=sflag, size = 0x4, scoped, tag = 'scoped memory for encoder_layer_forward.1']
    #allocation14 [shape = 'u8[16384]{0}', space=vmem, size = 0x4000, scoped, tag = 'output window, operand 0']
    %15 = vsyncpa [#allocation10], 0
    %16 = vsyncpa [#allocation13], 0
    %17 = vsyncpa [#allocation11], 0
    %s18 = scalar_lea.sflag [#allocation11], 1
    %19 = vsyncpa %s18, 0
    loop: start=0, step=1, limit=4
    $region2: #{encoder_layer_forward.1} parent=1 // loop_pre_header
      _
    $region3: #{encoder_layer_forward.1} parent=1 // loop_header
      %s21 = sphi 0, %s25
      %p22 = scmp.ge.s32.totalorder %s21, 4
      %s28 = sphi 0, %s40
      %s29 = sphi 0, %s36
      %s30 = sphi 0, %s28
      %s31 = sphi 0, %s29
      %s32 = sphi 0, %s30
      %s33 = sphi 0, %s31
      %s43 = sphi 0, %s45
      %s46 = sphi 0, %s43
      %s47 = sphi 0, %s46
      %s63 = sphi 0, %s47
      %s71 = sphi 0, %s73
      %s74 = sphi 0, %s71
      %s75 = sphi 0, %s74
      %s91 = sphi 0, %s75
      %s99 = sphi 0, %s101
      %s102 = sphi 0, %s99
      %s103 = sphi 0, %s102
      %s119 = sphi 0, %s103
      %s123 = sphi 0, %s123
      %s125 = sphi 0, %s123
      %s126 = sphi 0, %s125
      %s140 = sphi 0, %s126
      %s144 = sphi 0, %s144
      %s146 = sphi 0, %s144
      %s147 = sphi 0, %s146
      %s161 = sphi 0, %s147
      %s165 = sphi 0, %s165
      %s167 = sphi 0, %s165
      %s168 = sphi 0, %s167
      %s182 = sphi 0, %s168
      %s186 = sphi 0, %s186
      %s188 = sphi 0, %s186
      %s189 = sphi 0, %s188
      %s203 = sphi 0, %s189
      %s207 = sphi 0, %s207
      %s209 = sphi 0, %s207
      %s210 = sphi 0, %s209
      %s224 = sphi 0, %s210
      %s228 = sphi 0, %s228
      %s230 = sphi 0, %s228
      %s231 = sphi 0, %s230
      %s245 = sphi 0, %s231
      %s249 = sphi 0, %s249
      %s251 = sphi 0, %s249
      %s252 = sphi 0, %s251
      %s266 = sphi 0, %s252
      %s272 = sphi 0, %s274
      %s275 = sphi 0, %s272
      %s276 = sphi 0, %s275
      %s292 = sphi 0, %s276
    $region4: #{encoder_layer_forward.1} parent=1 // loop_header_branch
      %24 = sbr.rel (%p22) target = $region8
    $region5: #{encoder_layer_forward.1} parent=1 // loop_body
      %s26 = ssub.s32 %s21, 1
      %s27 = ssub.s32 %s21, 2
      %s34 = sadd.s32 1, %s29
      %p35 = scmp.ge.s32.totalorder %s34, 1
      %s36 = scalar_select %p35, 0, %s34
      %s37 = sadd.s32 1, %s28
      %s38 = scalar_select %p35, %s37, %s28
      %p39 = scmp.ge.s32.totalorder %s38, 2
      %s40 = scalar_select %p39, 0, %s38
      %s41 = ssub.s32 %s28, %s40
      %p42 = scmp.eq.s32.totalorder %s41, 0
      %s44 = sadd.s32 %s43, 1
      %s45 = scalar_select %p42, %s43, %s44
      %p48 = pneg %p42
      %p49 = scmp.eq.s32.totalorder %s21, 1
      %p50 = por %p48, %p49
      %p51 = scmp.ne.s32.totalorder %s43, %s46
      %p52 = scmp.eq.s32.totalorder %s21, 0
      %p53 = por %p51, %p52
      %p54 = scmp.ne.s32.totalorder %s43, %s46
      %p55 = scmp.eq.s32.totalorder %s26, 1
      %p56 = por %p54, %p55
      %p57 = scmp.ne.s32.totalorder %s46, %s47
      %p58 = scmp.eq.s32.totalorder %s26, 0
      %p59 = por %p57, %p58
      %p60 = scmp.ne.s32.totalorder %s46, %s47
      %p61 = scmp.eq.s32.totalorder %s27, 1
      %p62 = por %p60, %p61
      %p64 = scmp.ne.s32.totalorder %s47, %s63
      %p65 = scmp.eq.s32.totalorder %s27, 0
      %p66 = por %p64, %p65
      %s67 = ssub.s32 %s28, %s40
      %s68 = ssub.s32 %s29, %s36
      %s69 = sor.u32 %s67, %s68
      %p70 = scmp.eq.s32.totalorder %s69, 0
      %s72 = sadd.s32 %s71, 1
      %s73 = scalar_select %p70, %s71, %s72
      %p76 = pneg %p70
      %p77 = scmp.eq.s32.totalorder %s21, 1
      %p78 = por %p76, %p77
      %p79 = scmp.ne.s32.totalorder %s71, %s74
      %p80 = scmp.eq.s32.totalorder %s21, 0
      %p81 = por %p79, %p80
      %p82 = scmp.ne.s32.totalorder %s71, %s74
      %p83 = scmp.eq.s32.totalorder %s26, 1
      %p84 = por %p82, %p83
      %p85 = scmp.ne.s32.totalorder %s74, %s75
      %p86 = scmp.eq.s32.totalorder %s26, 0
      %p87 = por %p85, %p86
      %p88 = scmp.ne.s32.totalorder %s74, %s75
      %p89 = scmp.eq.s32.totalorder %s27, 1
      %p90 = por %p88, %p89
      %p92 = scmp.ne.s32.totalorder %s75, %s91
      %p93 = scmp.eq.s32.totalorder %s27, 0
      %p94 = por %p92, %p93
      %s95 = ssub.s32 %s28, %s40
      %s96 = ssub.s32 %s29, %s36
      %s97 = sor.u32 %s95, %s96
      %p98 = scmp.eq.s32.totalorder %s97, 0
      %s100 = sadd.s32 %s99, 1
      %s101 = scalar_select %p98, %s99, %s100
      %p104 = pneg %p98
      %p105 = scmp.eq.s32.totalorder %s21, 1
      %p106 = por %p104, %p105
      %p107 = scmp.ne.s32.totalorder %s99, %s102
      %p108 = scmp.eq.s32.totalorder %s21, 0
      %p109 = por %p107, %p108
      %p110 = scmp.ne.s32.totalorder %s99, %s102
      %p111 = scmp.eq.s32.totalorder %s26, 1
      %p112 = por %p110, %p111
      %p113 = scmp.ne.s32.totalorder %s102, %s103
      %p114 = scmp.eq.s32.totalorder %s26, 0
      %p115 = por %p113, %p114
      %p116 = scmp.ne.s32.totalorder %s102, %s103
      %p117 = scmp.eq.s32.totalorder %s27, 1
      %p118 = por %p116, %p117
      %p120 = scmp.ne.s32.totalorder %s103, %s119
      %p121 = scmp.eq.s32.totalorder %s27, 0
      %p122 = por %p120, %p121
      %s124 = sadd.s32 %s123, 1
      %p127 = scmp.eq.s32.totalorder %s21, 1
      %p128 = scmp.ne.s32.totalorder %s123, %s125
      %p129 = scmp.eq.s32.totalorder %s21, 0
      %p130 = por %p128, %p129
      %p131 = scmp.ne.s32.totalorder %s123, %s125
      %p132 = scmp.eq.s32.totalorder %s26, 1
      %p133 = por %p131, %p132
      %p134 = scmp.ne.s32.totalorder %s125, %s126
      %p135 = scmp.eq.s32.totalorder %s26, 0
      %p136 = por %p134, %p135
      %p137 = scmp.ne.s32.totalorder %s125, %s126
      %p138 = scmp.eq.s32.totalorder %s27, 1
      %p139 = por %p137, %p138
      %p141 = scmp.ne.s32.totalorder %s126, %s140
      %p142 = scmp.eq.s32.totalorder %s27, 0
      %p143 = por %p141, %p142
      %s145 = sadd.s32 %s144, 1
      %p148 = scmp.eq.s32.totalorder %s21, 1
      %p149 = scmp.ne.s32.totalorder %s144, %s146
      %p150 = scmp.eq.s32.totalorder %s21, 0
      %p151 = por %p149, %p150
      %p152 = scmp.ne.s32.totalorder %s144, %s146
      %p153 = scmp.eq.s32.totalorder %s26, 1
      %p154 = por %p152, %p153
      %p155 = scmp.ne.s32.totalorder %s146, %s147
      %p156 = scmp.eq.s32.totalorder %s26, 0
      %p157 = por %p155, %p156
      %p158 = scmp.ne.s32.totalorder %s146, %s147
      %p159 = scmp.eq.s32.totalorder %s27, 1
      %p160 = por %p158, %p159
      %p162 = scmp.ne.s32.totalorder %s147, %s161
      %p163 = scmp.eq.s32.totalorder %s27, 0
      %p164 = por %p162, %p163
      %s166 = sadd.s32 %s165, 1
      %p169 = scmp.eq.s32.totalorder %s21, 1
      %p170 = scmp.ne.s32.totalorder %s165, %s167
      %p171 = scmp.eq.s32.totalorder %s21, 0
      %p172 = por %p170, %p171
      %p173 = scmp.ne.s32.totalorder %s165, %s167
      %p174 = scmp.eq.s32.totalorder %s26, 1
      %p175 = por %p173, %p174
      %p176 = scmp.ne.s32.totalorder %s167, %s168
      %p177 = scmp.eq.s32.totalorder %s26, 0
      %p178 = por %p176, %p177
      %p179 = scmp.ne.s32.totalorder %s167, %s168
      %p180 = scmp.eq.s32.totalorder %s27, 1
      %p181 = por %p179, %p180
      %p183 = scmp.ne.s32.totalorder %s168, %s182
      %p184 = scmp.eq.s32.totalorder %s27, 0
      %p185 = por %p183, %p184
      %s187 = sadd.s32 %s186, 1
      %p190 = scmp.eq.s32.totalorder %s21, 1
      %p191 = scmp.ne.s32.totalorder %s186, %s188
      %p192 = scmp.eq.s32.totalorder %s21, 0
      %p193 = por %p191, %p192
      %p194 = scmp.ne.s32.totalorder %s186, %s188
      %p195 = scmp.eq.s32.totalorder %s26, 1
      %p196 = por %p194, %p195
      %p197 = scmp.ne.s32.totalorder %s188, %s189
      %p198 = scmp.eq.s32.totalorder %s26, 0
      %p199 = por %p197, %p198
      %p200 = scmp.ne.s32.totalorder %s188, %s189
      %p201 = scmp.eq.s32.totalorder %s27, 1
      %p202 = por %p200, %p201
      %p204 = scmp.ne.s32.totalorder %s189, %s203
      %p205 = scmp.eq.s32.totalorder %s27, 0
      %p206 = por %p204, %p205
      %s208 = sadd.s32 %s207, 1
      %p211 = scmp.eq.s32.totalorder %s21, 1
      %p212 = scmp.ne.s32.totalorder %s207, %s209
      %p213 = scmp.eq.s32.totalorder %s21, 0
      %p214 = por %p212, %p213
      %p215 = scmp.ne.s32.totalorder %s207, %s209
      %p216 = scmp.eq.s32.totalorder %s26, 1
      %p217 = por %p215, %p216
      %p218 = scmp.ne.s32.totalorder %s209, %s210
      %p219 = scmp.eq.s32.totalorder %s26, 0
      %p220 = por %p218, %p219
      %p221 = scmp.ne.s32.totalorder %s209, %s210
      %p222 = scmp.eq.s32.totalorder %s27, 1
      %p223 = por %p221, %p222
      %p225 = scmp.ne.s32.totalorder %s210, %s224
      %p226 = scmp.eq.s32.totalorder %s27, 0
      %p227 = por %p225, %p226
      %s229 = sadd.s32 %s228, 1
      %p232 = scmp.eq.s32.totalorder %s21, 1
      %p233 = scmp.ne.s32.totalorder %s228, %s230
      %p234 = scmp.eq.s32.totalorder %s21, 0
      %p235 = por %p233, %p234
      %p236 = scmp.ne.s32.totalorder %s228, %s230
      %p237 = scmp.eq.s32.totalorder %s26, 1
      %p238 = por %p236, %p237
      %p239 = scmp.ne.s32.totalorder %s230, %s231
      %p240 = scmp.eq.s32.totalorder %s26, 0
      %p241 = por %p239, %p240
      %p242 = scmp.ne.s32.totalorder %s230, %s231
      %p243 = scmp.eq.s32.totalorder %s27, 1
      %p244 = por %p242, %p243
      %p246 = scmp.ne.s32.totalorder %s231, %s245
      %p247 = scmp.eq.s32.totalorder %s27, 0
      %p248 = por %p246, %p247
      %s250 = sadd.s32 %s249, 1
      %p253 = scmp.eq.s32.totalorder %s21, 1
      %p254 = scmp.ne.s32.totalorder %s249, %s251
      %p255 = scmp.eq.s32.totalorder %s21, 0
      %p256 = por %p254, %p255
      %p257 = scmp.ne.s32.totalorder %s249, %s251
      %p258 = scmp.eq.s32.totalorder %s26, 1
      %p259 = por %p257, %p258
      %p260 = scmp.ne.s32.totalorder %s251, %s252
      %p261 = scmp.eq.s32.totalorder %s26, 0
      %p262 = por %p260, %p261
      %p263 = scmp.ne.s32.totalorder %s251, %s252
      %p264 = scmp.eq.s32.totalorder %s27, 1
      %p265 = por %p263, %p264
      %p267 = scmp.ne.s32.totalorder %s252, %s266
      %p268 = scmp.eq.s32.totalorder %s27, 0
      %p269 = por %p267, %p268
      %s270 = ssub.s32 %s28, %s40
      %p271 = scmp.eq.s32.totalorder %s270, 0
      %s273 = sadd.s32 %s272, 1
      %s274 = scalar_select %p271, %s272, %s273
      %p277 = pneg %p271
      %p278 = scmp.eq.s32.totalorder %s21, 1
      %p279 = por %p277, %p278
      %p280 = scmp.ne.s32.totalorder %s272, %s275
      %p281 = scmp.eq.s32.totalorder %s21, 0
      %p282 = por %p280, %p281
      %p283 = scmp.ne.s32.totalorder %s272, %s275
      %p284 = scmp.eq.s32.totalorder %s26, 1
      %p285 = por %p283, %p284
      %p286 = scmp.ne.s32.totalorder %s275, %s276
      %p287 = scmp.eq.s32.totalorder %s26, 0
      %p288 = por %p286, %p287
      %p289 = scmp.ne.s32.totalorder %s275, %s276
      %p290 = scmp.eq.s32.totalorder %s27, 1
      %p291 = por %p289, %p290
      %p293 = scmp.ne.s32.totalorder %s276, %s292
      %p294 = scmp.eq.s32.totalorder %s27, 0
      %p295 = por %p293, %p294
      %p296 = scmp.le.s32.totalorder 1, %s21
      %p297 = scmp.lt.s32.totalorder %s21, 3
      %p298 = pnand %p296, %p297
      %p299 = pneg %p298
      // Predicated region
      $region9: #{encoder_layer_forward.1} parent=5 // pred_check
        _
      $region10: #{encoder_layer_forward.1} parent=5 // pred_check_branch
        %301 = sbr.rel (%p298) target = $region12
      $region11: #{encoder_layer_forward.1} parent=5 // pred_region
        %s302 = ssub.s32 %s21, 1
        // Predicated region
        $region13: #{encoder_layer_forward.1} parent=11 // pred_check
          %p303 = pneg %p136
        $region14: #{encoder_layer_forward.1} parent=11 // pred_check_branch
          %305 = sbr.rel (%p303) target = $region16
        $region15: #{encoder_layer_forward.1} parent=11 // pred_region
          _
        $region16: #{encoder_layer_forward.1} parent=11 // pred_fallthru
          _
        // Predicated region
        $region17: #{encoder_layer_forward.1} parent=11 // pred_check
          %p306 = pneg %p157
        $region18: #{encoder_layer_forward.1} parent=11 // pred_check_branch
          %308 = sbr.rel (%p306) target = $region20
        $region19: #{encoder_layer_forward.1} parent=11 // pred_region
          _
        $region20: #{encoder_layer_forward.1} parent=11 // pred_fallthru
          _
        // Predicated region
        $region21: #{encoder_layer_forward.1} parent=11 // pred_check
          %p309 = pneg %p178
        $region22: #{encoder_layer_forward.1} parent=11 // pred_check_branch
          %311 = sbr.rel (%p309) target = $region24
        $region23: #{encoder_layer_forward.1} parent=11 // pred_region
          _
        $region24: #{encoder_layer_forward.1} parent=11 // pred_fallthru
          _
        // Predicated region
        $region25: #{encoder_layer_forward.1} parent=11 // pred_check
          %p312 = pneg %p199
        $region26: #{encoder_layer_forward.1} parent=11 // pred_check_branch
          %314 = sbr.rel (%p312) target = $region28
        $region27: #{encoder_layer_forward.1} parent=11 // pred_region
          %s316 = ssub.s32 512, 512
          %317 = vsyncadd [#allocation10], %s316
          %s318 = sshll.u32 [#allocation9], 4
          %s319 = int_to_ptr.vmem [resolvable:$true] %s318
          %324 = dma.hbm_to_vmem [thread:$0]  %s6, 512, %s319, [#allocation10], 128, 128, 8
        $region28: #{encoder_layer_forward.1} parent=11 // pred_fallthru
          _
        // Predicated region
        $region29: #{encoder_layer_forward.1} parent=11 // pred_check
          %p325 = pneg %p220
        $region30: #{encoder_layer_forward.1} parent=11 // pred_check_branch
          %327 = sbr.rel (%p325) target = $region32
        $region31: #{encoder_layer_forward.1} parent=11 // pred_region
          _
        $region32: #{encoder_layer_forward.1} parent=11 // pred_fallthru
          _
        // Predicated region
        $region33: #{encoder_layer_forward.1} parent=11 // pred_check
          %p328 = pneg %p241
        $region34: #{encoder_layer_forward.1} parent=11 // pred_check_branch
          %330 = sbr.rel (%p328) target = $region36
        $region35: #{encoder_layer_forward.1} parent=11 // pred_region
          %s332 = ssub.s32 512, 512
          %333 = vsyncadd [#allocation13], %s332
          %s334 = sshll.u32 [#allocation12], 4
          %s335 = int_to_ptr.vmem [resolvable:$true] %s334
          %340 = dma.hbm_to_vmem [thread:$0]  %s8, 512, %s335, [#allocation13], 128, 128, 8
        $region36: #{encoder_layer_forward.1} parent=11 // pred_fallthru
          _
        // Predicated region
        $region37: #{encoder_layer_forward.1} parent=11 // pred_check
          %p341 = pneg %p262
        $region38: #{encoder_layer_forward.1} parent=11 // pred_check_branch
          %343 = sbr.rel (%p341) target = $region40
        $region39: #{encoder_layer_forward.1} parent=11 // pred_region
          _
        $region40: #{encoder_layer_forward.1} parent=11 // pred_fallthru
          _
      $region12: #{encoder_layer_forward.1} parent=5 // pred_fallthru
        _
      %p344 = scmp.lt.s32.totalorder %s21, 2
      // Predicated region
      $region41: #{encoder_layer_forward.1} parent=5 // pred_check
        %p345 = pneg %p344
      $region42: #{encoder_layer_forward.1} parent=5 // pred_check_branch
        %347 = sbr.rel (%p345) target = $region44
      $region43: #{encoder_layer_forward.1} parent=5 // pred_region
        // Predicated region
        $region45: #{encoder_layer_forward.1} parent=43 // pred_check
          %p348 = pneg %p53
        $region46: #{encoder_layer_forward.1} parent=43 // pred_check_branch
          %350 = sbr.rel (%p348) target = $region48
        $region47: #{encoder_layer_forward.1} parent=43 // pred_region
          %p351 = scmp.lt.s32.totalorder %s28, 1
          %s352 = scalar_select %p351, %s28, 1
          %s353 = smul.addr %s352, 2
          %s354 = smul.addr %s353, 8
          %s355 = scalar_lea.vmem %s0, %s354
        $region48: #{encoder_layer_forward.1} parent=43 // pred_fallthru
          _
        // Predicated region
        $region49: #{encoder_layer_forward.1} parent=43 // pred_check
          %p356 = pneg %p81
        $region50: #{encoder_layer_forward.1} parent=43 // pred_check_branch
          %358 = sbr.rel (%p356) target = $region52
        $region51: #{encoder_layer_forward.1} parent=43 // pred_region
          %p359 = scmp.lt.s32.totalorder %s28, 1
          %s360 = scalar_select %p359, %s28, 1
          %p361 = scmp.lt.s32.totalorder %s29, 0
          %s362 = scalar_select %p361, %s29, 0
          %s363 = smul.addr %s360, 2
          %s364 = sadd.s32 %s362, %s363
          %s365 = smul.addr %s364, 8
          %s366 = scalar_lea.vmem %s1, %s365
        $region52: #{encoder_layer_forward.1} parent=43 // pred_fallthru
          _
        // Predicated region
        $region53: #{encoder_layer_forward.1} parent=43 // pred_check
          %p367 = pneg %p109
        $region54: #{encoder_layer_forward.1} parent=43 // pred_check_branch
          %369 = sbr.rel (%p367) target = $region56
        $region55: #{encoder_layer_forward.1} parent=43 // pred_region
          %p370 = scmp.lt.s32.totalorder %s28, 1
          %s371 = scalar_select %p370, %s28, 1
          %p372 = scmp.lt.s32.totalorder %s29, 0
          %s373 = scalar_select %p372, %s29, 0
          %s374 = smul.addr %s371, 2
          %s375 = sadd.s32 %s373, %s374
          %s376 = smul.addr %s375, 8
          %s377 = scalar_lea.vmem %s2, %s376
        $region56: #{encoder_layer_forward.1} parent=43 // pred_fallthru
          _
      $region44: #{encoder_layer_forward.1} parent=5 // pred_fallthru
        _
      %p378 = scmp.le.s32.totalorder 1, %s21
      %p379 = scmp.lt.s32.totalorder %s21, 3
      %p380 = pnand %p378, %p379
      %p381 = pneg %p380
      // Predicated region
      $region57: #{encoder_layer_forward.1} parent=5 // pred_check
        _
      $region58: #{encoder_layer_forward.1} parent=5 // pred_check_branch
        %383 = sbr.rel (%p380) target = $region60
      $region59: #{encoder_layer_forward.1} parent=5 // pred_region
        %s384 = ssub.s32 %s21, 1
        // Predicated region
        $region61: #{encoder_layer_forward.1} parent=59 // pred_check
          %p385 = pneg %p199
        $region62: #{encoder_layer_forward.1} parent=59 // pred_check_branch
          %387 = sbr.rel (%p385) target = $region64
        $region63: #{encoder_layer_forward.1} parent=59 // pred_region
          %388 = dma.done [#allocation10], 512
        $region64: #{encoder_layer_forward.1} parent=59 // pred_fallthru
          _
        // Predicated region
        $region65: #{encoder_layer_forward.1} parent=59 // pred_check
          %p389 = pneg %p241
        $region66: #{encoder_layer_forward.1} parent=59 // pred_check_branch
          %391 = sbr.rel (%p389) target = $region68
        $region67: #{encoder_layer_forward.1} parent=59 // pred_region
          %392 = dma.done [#allocation13], 512
        $region68: #{encoder_layer_forward.1} parent=59 // pred_fallthru
          _
        %p393 = scmp.lt.s32.totalorder %s30, 1
        %s394 = scalar_select %p393, %s30, 1
        %s395 = smul.addr %s394, 2
        %s396 = smul.addr %s395, 8
        %s397 = scalar_lea.vmem %s0, %s396
        %p398 = pneg %p59
        %p399 = pneg %p56
        %p400 = scmp.lt.s32.totalorder %s30, 1
        %s401 = scalar_select %p400, %s30, 1
        %p402 = scmp.lt.s32.totalorder %s31, 0
        %s403 = scalar_select %p402, %s31, 0
        %s404 = smul.addr %s401, 2
        %s405 = sadd.s32 %s403, %s404
        %s406 = smul.addr %s405, 8
        %s407 = scalar_lea.vmem %s1, %s406
        %p408 = pneg %p87
        %p409 = pneg %p84
        %p410 = scmp.lt.s32.totalorder %s30, 1
        %s411 = scalar_select %p410, %s30, 1
        %p412 = scmp.lt.s32.totalorder %s31, 0
        %s413 = scalar_select %p412, %s31, 0
        %s414 = smul.addr %s411, 2
        %s415 = sadd.s32 %s413, %s414
        %s416 = smul.addr %s415, 8
        %s417 = scalar_lea.vmem %s2, %s416
        %p418 = pneg %p115
        %p419 = pneg %p112
        %p420 = pneg %p136
        %p421 = pneg %p133
        %p422 = pneg %p157
        %p423 = pneg %p154
        %p424 = pneg %p178
        %p425 = pneg %p175
        %p426 = pneg %p199
        %p427 = pneg %p196
        %p428 = pneg %p220
        %p429 = pneg %p217
        %p430 = pneg %p241
        %p431 = pneg %p238
        %p432 = pneg %p262
        %p433 = pneg %p259
        %p434 = pneg %p288
        %p435 = pneg %p285
        %s436 = sand.u32 %s275, 1
        %s437 = scalar_lea.sflag [#allocation11], %s436
        %s438 = sand.u32 %s275, 1
        %s439 = smul.addr %s438, 16
        %s440 = scalar_lea.vmem [#allocation14], %s439
        %p441 = scmp.lt.s32.totalorder %s30, 1
        %s442 = scalar_select %p441, %s30, 1
        %s443 = smul.addr %s442, 2
        %s444 = smul.addr %s443, 8
        %s445 = scalar_lea.vmem %s0, %s444
        %p446 = scmp.lt.s32.totalorder %s30, 1
        %s447 = scalar_select %p446, %s30, 1
        %p448 = scmp.lt.s32.totalorder %s31, 0
        %s449 = scalar_select %p448, %s31, 0
        %s450 = smul.addr %s447, 2
        %s451 = sadd.s32 %s449, %s450
        %s452 = smul.addr %s451, 8
        %s453 = scalar_lea.vmem %s1, %s452
        %p454 = scmp.lt.s32.totalorder %s30, 1
        %s455 = scalar_select %p454, %s30, 1
        %p456 = scmp.lt.s32.totalorder %s31, 0
        %s457 = scalar_select %p456, %s31, 0
        %s458 = smul.addr %s455, 2
        %s459 = sadd.s32 %s457, %s458
        %s460 = smul.addr %s459, 8
        %s461 = scalar_lea.vmem %s2, %s460
        %p462 = scmp.eq.s32.totalorder %s31, 0
        // Predicated region
        $region69: #{encoder_layer_forward.1} parent=59 // pred_check
          %p463 = pneg %p462
        $region70: #{encoder_layer_forward.1} parent=59 // pred_check_branch
          %465 = sbr.rel (%p463) target = $region72
        $region71: #{encoder_layer_forward.1} parent=59 // pred_region
          %v466 = vld [vmem:[%s445] sm:$0xff]
          %v467 = vld [vmem:[%s445 + $0x8] sm:$0xff]
          %v468 = vld [vmem:[%s3] sm:$0xff]
          %v469 = vld [vmem:[%s3 + $0x8] sm:$0xff]
          %v470 = vld [vmem:[%s3 + $0x10] sm:$0xff]
          %v471 = vld [vmem:[%s3 + $0x18] sm:$0xff]
          %v472 = vld [vmem:[%s4] sm:$0x1]
          %v474 = vlaneseq
          %v475 = vshrl.u32 %v474, 7
          %v476 = vsub.s32 0, %v475
          %v477 = vrot.slane %v472, %v476
          %vm479 = vcmask 261120
          %v481 = vsel %vm479, %v466, 0
          %v484 = vsel %vm479, %v467, 0
          %486 = vmatprep.subr.mxu0 0.0
          %487 = vmatpush1.msra.mxu0 0.0
          %488 = vmatprep.subr.mxu0 0.0
          %489 = vmatpush1.msra.mxu0 0.0
          %490 = vmatprep.subr.mxu0 0.0
          %491 = vmatpush1.msra.mxu0 0.0
          %492 = vmatprep.subr.mxu0 0.0
          %493 = vmatpush1.msra.mxu0 0.0
          %494 = vmatprep.subr.mxu0 0.0
          %495 = vmatpush1.msra.mxu0 0.0
          %496 = vmatprep.subr.mxu0 0.0
          %497 = vmatpush1.msra.mxu0 0.0
          %498 = vmatprep.subr.mxu0 0.0
          %499 = vmatpush1.msra.mxu0 0.0
          %500 = vmatprep.subr.mxu0 0.0
          %501 = vmatpush1.msra.mxu0 0.0
          %502 = vmatprep.subr.mxu0 0.0
          %503 = vmatpush1.msra.mxu0 0.0
          %504 = vmatprep.subr.mxu0 0.0
          %505 = vmatpush1.msra.mxu0 0.0
          %506 = vmatprep.subr.mxu0 0.0
          %507 = vmatpush1.msra.mxu0 0.0
          %508 = vmatprep.subr.mxu0 0.0
          %509 = vmatpush1.msra.mxu0 0.0
          %510 = vmatprep.subr.mxu0 0.0
          %511 = vmatpush1.msra.mxu0 %v471
          %512 = vmatprep.subr.mxu0 0.0
          %513 = vmatpush1.msra.mxu0 %v470
          %514 = vmatprep.subr.mxu0 0.0
          %515 = vmatpush1.msra.mxu0 %v469
          %516 = vmatprep.subr.mxu0 0.0
          %517 = vmatpush1.msra.mxu0 %v468
          %518 = vmatprep.subr.mxu0 0.0
          %519 = vmatpush2.msra.mxu0 0.0
          %520 = vmatprep.subr.mxu0 0.0
          %521 = vmatpush2.msra.mxu0 0.0
          %522 = vmatprep.subr.mxu0 0.0
          %523 = vmatpush2.msra.mxu0 0.0
          %524 = vmatprep.subr.mxu0 0.0
          %525 = vmatpush2.msra.mxu0 0.0
          %526 = vmatprep.subr.mxu0 0.0
          %527 = vmatpush2.msra.mxu0 0.0
          %528 = vmatprep.subr.mxu0 0.0
          %529 = vmatpush2.msra.mxu0 0.0
          %530 = vmatprep.subr.mxu0 0.0
          %531 = vmatpush2.msra.mxu0 0.0
          %532 = vmatprep.subr.mxu0 0.0
          %533 = vmatpush2.msra.mxu0 0.0
          %534 = vmatprep.subr.mxu0 0.0
          %535 = vmatpush2.msra.mxu0 0.0
          %536 = vmatprep.subr.mxu0 0.0
          %537 = vmatpush2.msra.mxu0 0.0
          %538 = vmatprep.subr.mxu0 0.0
          %539 = vmatpush2.msra.mxu0 0.0
          %540 = vmatprep.subr.mxu0 0.0
          %541 = vmatpush2.msra.mxu0 0.0
          %542 = vmatprep.subr.mxu0 0.0
          %543 = vmatpush2.msra.mxu0 0.0
          %544 = vmatprep.subr.mxu0 0.0
          %545 = vmatpush2.msra.mxu0 0.0
          %546 = vmatprep.subr.mxu0 0.0
          %547 = vmatpush2.msra.mxu0 0.0
          %548 = vmatprep.subr.mxu0 0.0
          %549 = vmatpush2.msra.mxu0 0.0
          %550 = vmatprep.mubr.f32.mxu0 0.0
          %551 = vmatmul.mubr.f32.gmra.mxu0 %v481
          %v552 = vpop.f32.mrf.mxu0
          %v553 = vadd.f32 %v477, %v552
          %v554 = vpop.f32.mrf.mxu0
          %555 = vmatprep.mubr.f32.mxu0 0.0
          %556 = vmatmul.mubr.f32.gmra.mxu0 %v484
          %v557 = vpop.f32.mrf.mxu0
          %v558 = vadd.f32 %v477, %v557
          %v559 = vpop.f32.mrf.mxu0
          %560 = vdwg.mxu0
          %vm561 = vcmask 64512
          %562 = vst.msk [vmem:[#allocation2] sm:$0xff] %vm561, %v553
          %563 = vst.msk [vmem:[#allocation2 + $0x8] sm:$0xff] %vm561, %v558
          %566 = vrot.lane.b32.xlu0 %v553, 96
          %v567 = vpop.permute.xlu0 %566
          %568 = vrot.lane.b32.xlu0 %v558, 96
          %v569 = vpop.permute.xlu0 %568
          %572 = vst.msk [vmem:[#allocation3] sm:$0xff] %vm561, %v567
          %573 = vst.msk [vmem:[#allocation3 + $0x8] sm:$0xff] %vm561, %v569
          %574 = vrot.lane.b32.xlu0 %v553, 64
          %v575 = vpop.permute.xlu0 %574
          %576 = vrot.lane.b32.xlu0 %v558, 64
          %v577 = vpop.permute.xlu0 %576
          %580 = vst.msk [vmem:[#allocation4] sm:$0xff] %vm561, %v575
          %581 = vst.msk [vmem:[#allocation4 + $0x8] sm:$0xff] %vm561, %v577
          %582 = vrot.lane.b32.xlu0 %v553, 120
          %v583 = vpop.permute.xlu0 %582
          %584 = vrot.lane.b32.xlu0 %v558, 120
          %v585 = vpop.permute.xlu0 %584
          %s588 = scalar_lea.vmem [#allocation2], 16
          %589 = vst.msk [vmem:[%s588] sm:$0xff] %vm561, %v583
          %590 = vst.msk [vmem:[%s588 + $0x8] sm:$0xff] %vm561, %v585
          %591 = vrot.lane.b32.xlu0 %v553, 88
          %v592 = vpop.permute.xlu0 %591
          %593 = vrot.lane.b32.xlu0 %v558, 88
          %v594 = vpop.permute.xlu0 %593
          %s597 = scalar_lea.vmem [#allocation3], 16
          %598 = vst.msk [vmem:[%s597] sm:$0xff] %vm561, %v592
          %599 = vst.msk [vmem:[%s597 + $0x8] sm:$0xff] %vm561, %v594
          %600 = vrot.lane.b32.xlu0 %v553, 56
          %v601 = vpop.permute.xlu0 %600
          %602 = vrot.lane.b32.xlu0 %v558, 56
          %v603 = vpop.permute.xlu0 %602
          %s606 = scalar_lea.vmem [#allocation4], 16
          %607 = vst.msk [vmem:[%s606] sm:$0xff] %vm561, %v601
          %608 = vst.msk [vmem:[%s606 + $0x8] sm:$0xff] %vm561, %v603
          %609 = vrot.lane.b32.xlu0 %v553, 112
          %v610 = vpop.permute.xlu0 %609
          %611 = vrot.lane.b32.xlu0 %v558, 112
          %v612 = vpop.permute.xlu0 %611
          %s615 = scalar_lea.vmem [#allocation2], 32
          %616 = vst.msk [vmem:[%s615] sm:$0xff] %vm561, %v610
          %617 = vst.msk [vmem:[%s615 + $0x8] sm:$0xff] %vm561, %v612
          %618 = vrot.lane.b32.xlu0 %v553, 80
          %v619 = vpop.permute.xlu0 %618
          %620 = vrot.lane.b32.xlu0 %v558, 80
          %v621 = vpop.permute.xlu0 %620
          %s624 = scalar_lea.vmem [#allocation3], 32
          %625 = vst.msk [vmem:[%s624] sm:$0xff] %vm561, %v619
          %626 = vst.msk [vmem:[%s624 + $0x8] sm:$0xff] %vm561, %v621
          %627 = vrot.lane.b32.xlu0 %v553, 48
          %v628 = vpop.permute.xlu0 %627
          %629 = vrot.lane.b32.xlu0 %v558, 48
          %v630 = vpop.permute.xlu0 %629
          %s633 = scalar_lea.vmem [#allocation4], 32
          %634 = vst.msk [vmem:[%s633] sm:$0xff] %vm561, %v628
          %635 = vst.msk [vmem:[%s633 + $0x8] sm:$0xff] %vm561, %v630
          %636 = vrot.lane.b32.xlu0 %v553, 104
          %v637 = vpop.permute.xlu0 %636
          %638 = vrot.lane.b32.xlu0 %v558, 104
          %v639 = vpop.permute.xlu0 %638
          %s642 = scalar_lea.vmem [#allocation2], 48
          %643 = vst.msk [vmem:[%s642] sm:$0xff] %vm561, %v637
          %644 = vst.msk [vmem:[%s642 + $0x8] sm:$0xff] %vm561, %v639
          %645 = vrot.lane.b32.xlu0 %v553, 72
          %v646 = vpop.permute.xlu0 %645
          %647 = vrot.lane.b32.xlu0 %v558, 72
          %v648 = vpop.permute.xlu0 %647
          %s651 = scalar_lea.vmem [#allocation3], 48
          %652 = vst.msk [vmem:[%s651] sm:$0xff] %vm561, %v646
          %653 = vst.msk [vmem:[%s651 + $0x8] sm:$0xff] %vm561, %v648
          %654 = vrot.lane.b32.xlu0 %v553, 40
          %v655 = vpop.permute.xlu0 %654
          %656 = vrot.lane.b32.xlu0 %v558, 40
          %v657 = vpop.permute.xlu0 %656
          %s660 = scalar_lea.vmem [#allocation4], 48
          %661 = vst.msk [vmem:[%s660] sm:$0xff] %vm561, %v655
          %662 = vst.msk [vmem:[%s660 + $0x8] sm:$0xff] %vm561, %v657
          %vm663 = vcmask 7168
          %664 = vst.msk [vmem:[#allocation5] sm:$0xff] %vm663, -inf
          %665 = vst.msk [vmem:[#allocation5 + $0x8] sm:$0xff] %vm663, -inf
          %666 = vst.msk [vmem:[#allocation5 + $0x10] sm:$0xff] %vm663, -inf
          %667 = vst.msk [vmem:[#allocation5 + $0x18] sm:$0xff] %vm663, -inf
          %668 = vst.msk [vmem:[#allocation5 + $0x20] sm:$0xff] %vm663, -inf
          %669 = vst.msk [vmem:[#allocation5 + $0x28] sm:$0xff] %vm663, -inf
          %670 = vst.msk [vmem:[#allocation5 + $0x30] sm:$0xff] %vm663, -inf
          %671 = vst.msk [vmem:[#allocation5 + $0x38] sm:$0xff] %vm663, -inf
          %672 = vst.msk [vmem:[#allocation6] sm:$0xff] %vm663, 0.0
          %673 = vst.msk [vmem:[#allocation6 + $0x8] sm:$0xff] %vm663, 0.0
          %674 = vst.msk [vmem:[#allocation6 + $0x10] sm:$0xff] %vm663, 0.0
          %675 = vst.msk [vmem:[#allocation6 + $0x18] sm:$0xff] %vm663, 0.0
          %676 = vst.msk [vmem:[#allocation6 + $0x20] sm:$0xff] %vm663, 0.0
          %677 = vst.msk [vmem:[#allocation6 + $0x28] sm:$0xff] %vm663, 0.0
          %678 = vst.msk [vmem:[#allocation6 + $0x30] sm:$0xff] %vm663, 0.0
          %679 = vst.msk [vmem:[#allocation6 + $0x38] sm:$0xff] %vm663, 0.0
          %680 = vst.msk [vmem:[#allocation7] sm:$0xff] %vm561, 0.0
          %681 = vst.msk [vmem:[#allocation7 + $0x8] sm:$0xff] %vm561, 0.0
          %682 = vst.msk [vmem:[#allocation7 + $0x10] sm:$0xff] %vm561, 0.0
          %683 = vst.msk [vmem:[#allocation7 + $0x18] sm:$0xff] %vm561, 0.0
          %684 = vst.msk [vmem:[#allocation7 + $0x20] sm:$0xff] %vm561, 0.0
          %685 = vst.msk [vmem:[#allocation7 + $0x28] sm:$0xff] %vm561, 0.0
          %686 = vst.msk [vmem:[#allocation7 + $0x30] sm:$0xff] %vm561, 0.0
          %687 = vst.msk [vmem:[#allocation7 + $0x38] sm:$0xff] %vm561, 0.0
        $region72: #{encoder_layer_forward.1} parent=59 // pred_fallthru
          _
        %s688 = smul.u32 %s31, 16
        %v689 = vld [vmem:[#allocation2] sm:$0xff]
        %v690 = vld [vmem:[#allocation2 + $0x8] sm:$0xff]
        %v691 = vld [vmem:[#allocation2 + $0x10] sm:$0xff]
        %v692 = vld [vmem:[#allocation2 + $0x18] sm:$0xff]
        %v693 = vld [vmem:[#allocation2 + $0x20] sm:$0xff]
        %v694 = vld [vmem:[#allocation2 + $0x28] sm:$0xff]
        %v695 = vld [vmem:[#allocation2 + $0x30] sm:$0xff]
        %v696 = vld [vmem:[#allocation2 + $0x38] sm:$0xff]
        %s697 = scalar_lea.vmem [#allocation3], %s688
        %v698 = vld [vmem:[%s697] sm:$0xff]
        %v699 = vld [vmem:[%s697 + $0x8] sm:$0xff]
        %v700 = vld [vmem:[%s697 + $0x10] sm:$0xff]
        %v701 = vld [vmem:[%s697 + $0x18] sm:$0xff]
        %v702 = vld [vmem:[%s697 + $0x20] sm:$0xff]
        %v703 = vld [vmem:[%s697 + $0x28] sm:$0xff]
        %v704 = vld [vmem:[%s697 + $0x30] sm:$0xff]
        %v705 = vld [vmem:[%s697 + $0x38] sm:$0xff]
        %s706 = scalar_lea.vmem [#allocation4], %s688
        %v707 = vld [vmem:[%s706] sm:$0xff]
        %v708 = vld [vmem:[%s706 + $0x8] sm:$0xff]
        %v709 = vld [vmem:[%s706 + $0x10] sm:$0xff]
        %v710 = vld [vmem:[%s706 + $0x18] sm:$0xff]
        %v711 = vld [vmem:[%s706 + $0x20] sm:$0xff]
        %v712 = vld [vmem:[%s706 + $0x28] sm:$0xff]
        %v713 = vld [vmem:[%s706 + $0x30] sm:$0xff]
        %v714 = vld [vmem:[%s706 + $0x38] sm:$0xff]
        %vm715 = vcmask 64512
        %v717 = vsel %vm715, %v689, 0
        %v720 = vsel %vm715, %v690, 0
        %v723 = vsel %vm715, %v698, 0
        %v726 = vsel %vm715, %v699, 0
        %728 = vmatprep.subr.mxu0 0.0
        %729 = vmatpush1.xpose.msra.mxu0 0.0
        %730 = vmatprep.subr.mxu0 0.0
        %731 = vmatpush1.xpose.msra.mxu0 0.0
        %732 = vmatprep.subr.mxu0 0.0
        %733 = vmatpush1.xpose.msra.mxu0 0.0
        %734 = vmatprep.subr.mxu0 0.0
        %735 = vmatpush1.xpose.msra.mxu0 0.0
        %736 = vmatprep.subr.mxu0 0.0
        %737 = vmatpush1.xpose.msra.mxu0 0.0
        %738 = vmatprep.subr.mxu0 0.0
        %739 = vmatpush1.xpose.msra.mxu0 0.0
        %740 = vmatprep.subr.mxu0 0.0
        %741 = vmatpush1.xpose.msra.mxu0 0.0
        %742 = vmatprep.subr.mxu0 0.0
        %743 = vmatpush1.xpose.msra.mxu0 0.0
        %744 = vmatprep.subr.mxu0 0.0
        %745 = vmatpush1.xpose.msra.mxu0 0.0
        %746 = vmatprep.subr.mxu0 0.0
        %747 = vmatpush1.xpose.msra.mxu0 0.0
        %748 = vmatprep.subr.mxu0 0.0
        %749 = vmatpush1.xpose.msra.mxu0 0.0
        %750 = vmatprep.subr.mxu0 0.0
        %751 = vmatpush1.xpose.msra.mxu0 0.0
        %752 = vmatprep.subr.mxu0 0.0
        %753 = vmatpush1.xpose.msra.mxu0 0.0
        %754 = vmatprep.subr.mxu0 0.0
        %755 = vmatpush1.xpose.msra.mxu0 0.0
        %756 = vmatprep.subr.mxu0 0.0
        %757 = vmatpush1.xpose.msra.mxu0 %v726
        %758 = vmatprep.subr.mxu0 0.0
        %759 = vmatpush1.xpose.msra.mxu0 %v723
        %760 = vmatprep.subr.mxu0 0.0
        %761 = vmatpush2.xpose.msra.mxu0 0.0
        %762 = vmatprep.subr.mxu0 0.0
        %763 = vmatpush2.xpose.msra.mxu0 0.0
        %764 = vmatprep.subr.mxu0 0.0
        %765 = vmatpush2.xpose.msra.mxu0 0.0
        %766 = vmatprep.subr.mxu0 0.0
        %767 = vmatpush2.xpose.msra.mxu0 0.0
        %768 = vmatprep.subr.mxu0 0.0
        %769 = vmatpush2.xpose.msra.mxu0 0.0
        %770 = vmatprep.subr.mxu0 0.0
        %771 = vmatpush2.xpose.msra.mxu0 0.0
        %772 = vmatprep.subr.mxu0 0.0
        %773 = vmatpush2.xpose.msra.mxu0 0.0
        %774 = vmatprep.subr.mxu0 0.0
        %775 = vmatpush2.xpose.msra.mxu0 0.0
        %776 = vmatprep.subr.mxu0 0.0
        %777 = vmatpush2.xpose.msra.mxu0 0.0
        %778 = vmatprep.subr.mxu0 0.0
        %779 = vmatpush2.xpose.msra.mxu0 0.0
        %780 = vmatprep.subr.mxu0 0.0
        %781 = vmatpush2.xpose.msra.mxu0 0.0
        %782 = vmatprep.subr.mxu0 0.0
        %783 = vmatpush2.xpose.msra.mxu0 0.0
        %784 = vmatprep.subr.mxu0 0.0
        %785 = vmatpush2.xpose.msra.mxu0 0.0
        %786 = vmatprep.subr.mxu0 0.0
        %787 = vmatpush2.xpose.msra.mxu0 0.0
        %788 = vmatprep.subr.mxu0 0.0
        %789 = vmatpush2.xpose.msra.mxu0 0.0
        %790 = vmatprep.subr.mxu0 0.0
        %791 = vmatpush2.xpose.msra.mxu0 0.0
        %792 = vmatprep.mubr.f32.mxu0 0.0
        %793 = vmatmul.mubr.f32.gmra.mxu0 %v717
        %v794 = vpop.f32.mrf.mxu0
        %v795 = vadd.f32 0.0, %v794
        %v796 = vpop.f32.mrf.mxu0
        %797 = vmatprep.mubr.f32.mxu0 0.0
        %798 = vmatmul.mubr.f32.gmra.mxu0 %v720
        %v799 = vpop.f32.mrf.mxu0
        %v800 = vadd.f32 0.0, %v799
        %v801 = vpop.f32.mrf.mxu0
        %802 = vdwg.mxu0
        %v804 = vsel %vm715, %v691, 0
        %v807 = vsel %vm715, %v692, 0
        %v810 = vsel %vm715, %v700, 0
        %v813 = vsel %vm715, %v701, 0
        %815 = vmatprep.subr.mxu0 0.0
        %816 = vmatpush1.xpose.msra.mxu0 0.0
        %817 = vmatprep.subr.mxu0 0.0
        %818 = vmatpush1.xpose.msra.mxu0 0.0
        %819 = vmatprep.subr.mxu0 0.0
        %820 = vmatpush1.xpose.msra.mxu0 0.0
        %821 = vmatprep.subr.mxu0 0.0
        %822 = vmatpush1.xpose.msra.mxu0 0.0
        %823 = vmatprep.subr.mxu0 0.0
        %824 = vmatpush1.xpose.msra.mxu0 0.0
        %825 = vmatprep.subr.mxu0 0.0
        %826 = vmatpush1.xpose.msra.mxu0 0.0
        %827 = vmatprep.subr.mxu0 0.0
        %828 = vmatpush1.xpose.msra.mxu0 0.0
        %829 = vmatprep.subr.mxu0 0.0
        %830 = vmatpush1.xpose.msra.mxu0 0.0
        %831 = vmatprep.subr.mxu0 0.0
        %832 = vmatpush1.xpose.msra.mxu0 0.0
        %833 = vmatprep.subr.mxu0 0.0
        %834 = vmatpush1.xpose.msra.mxu0 0.0
        %835 = vmatprep.subr.mxu0 0.0
        %836 = vmatpush1.xpose.msra.mxu0 0.0
        %837 = vmatprep.subr.mxu0 0.0
        %838 = vmatpush1.xpose.msra.mxu0 0.0
        %839 = vmatprep.subr.mxu0 0.0
        %840 = vmatpush1.xpose.msra.mxu0 0.0
        %841 = vmatprep.subr.mxu0 0.0
        %842 = vmatpush1.xpose.msra.mxu0 0.0
        %843 = vmatprep.subr.mxu0 0.0
        %844 = vmatpush1.xpose.msra.mxu0 %v813
        %845 = vmatprep.subr.mxu0 0.0
        %846 = vmatpush1.xpose.msra.mxu0 %v810
        %847 = vmatprep.subr.mxu0 0.0
        %848 = vmatpush2.xpose.msra.mxu0 0.0
        %849 = vmatprep.subr.mxu0 0.0
        %850 = vmatpush2.xpose.msra.mxu0 0.0
        %851 = vmatprep.subr.mxu0 0.0
        %852 = vmatpush2.xpose.msra.mxu0 0.0
        %853 = vmatprep.subr.mxu0 0.0
        %854 = vmatpush2.xpose.msra.mxu0 0.0
        %855 = vmatprep.subr.mxu0 0.0
        %856 = vmatpush2.xpose.msra.mxu0 0.0
        %857 = vmatprep.subr.mxu0 0.0
        %858 = vmatpush2.xpose.msra.mxu0 0.0
        %859 = vmatprep.subr.mxu0 0.0
        %860 = vmatpush2.xpose.msra.mxu0 0.0
        %861 = vmatprep.subr.mxu0 0.0
        %862 = vmatpush2.xpose.msra.mxu0 0.0
        %863 = vmatprep.subr.mxu0 0.0
        %864 = vmatpush2.xpose.msra.mxu0 0.0
        %865 = vmatprep.subr.mxu0 0.0
        %866 = vmatpush2.xpose.msra.mxu0 0.0
        %867 = vmatprep.subr.mxu0 0.0
        %868 = vmatpush2.xpose.msra.mxu0 0.0
        %869 = vmatprep.subr.mxu0 0.0
        %870 = vmatpush2.xpose.msra.mxu0 0.0
        %871 = vmatprep.subr.mxu0 0.0
        %872 = vmatpush2.xpose.msra.mxu0 0.0
        %873 = vmatprep.subr.mxu0 0.0
        %874 = vmatpush2.xpose.msra.mxu0 0.0
        %875 = vmatprep.subr.mxu0 0.0
        %876 = vmatpush2.xpose.msra.mxu0 0.0
        %877 = vmatprep.subr.mxu0 0.0
        %878 = vmatpush2.xpose.msra.mxu0 0.0
        %879 = vmatprep.mubr.f32.mxu0 0.0
        %880 = vmatmul.mubr.f32.gmra.mxu0 %v804
        %v881 = vpop.f32.mrf.mxu0
        %v882 = vadd.f32 0.0, %v881
        %v883 = vpop.f32.mrf.mxu0
        %884 = vmatprep.mubr.f32.mxu0 0.0
        %885 = vmatmul.mubr.f32.gmra.mxu0 %v807
        %v886 = vpop.f32.mrf.mxu0
        %v887 = vadd.f32 0.0, %v886
        %v888 = vpop.f32.mrf.mxu0
        %889 = vdwg.mxu0
        %v891 = vsel %vm715, %v693, 0
        %v894 = vsel %vm715, %v694, 0
        %v897 = vsel %vm715, %v702, 0
        %v900 = vsel %vm715, %v703, 0
        %902 = vmatprep.subr.mxu0 0.0
        %903 = vmatpush1.xpose.msra.mxu0 0.0
        %904 = vmatprep.subr.mxu0 0.0
        %905 = vmatpush1.xpose.msra.mxu0 0.0
        %906 = vmatprep.subr.mxu0 0.0
        %907 = vmatpush1.xpose.msra.mxu0 0.0
        %908 = vmatprep.subr.mxu0 0.0
        %909 = vmatpush1.xpose.msra.mxu0 0.0
        %910 = vmatprep.subr.mxu0 0.0
        %911 = vmatpush1.xpose.msra.mxu0 0.0
        %912 = vmatprep.subr.mxu0 0.0
        %913 = vmatpush1.xpose.msra.mxu0 0.0
        %914 = vmatprep.subr.mxu0 0.0
        %915 = vmatpush1.xpose.msra.mxu0 0.0
        %916 = vmatprep.subr.mxu0 0.0
        %917 = vmatpush1.xpose.msra.mxu0 0.0
        %918 = vmatprep.subr.mxu0 0.0
        %919 = vmatpush1.xpose.msra.mxu0 0.0
        %920 = vmatprep.subr.mxu0 0.0
        %921 = vmatpush1.xpose.msra.mxu0 0.0
        %922 = vmatprep.subr.mxu0 0.0
        %923 = vmatpush1.xpose.msra.mxu0 0.0
        %924 = vmatprep.subr.mxu0 0.0
        %925 = vmatpush1.xpose.msra.mxu0 0.0
        %926 = vmatprep.subr.mxu0 0.0
        %927 = vmatpush1.xpose.msra.mxu0 0.0
        %928 = vmatprep.subr.mxu0 0.0
        %929 = vmatpush1.xpose.msra.mxu0 0.0
        %930 = vmatprep.subr.mxu0 0.0
        %931 = vmatpush1.xpose.msra.mxu0 %v900
        %932 = vmatprep.subr.mxu0 0.0
        %933 = vmatpush1.xpose.msra.mxu0 %v897
        %934 = vmatprep.subr.mxu0 0.0
        %935 = vmatpush2.xpose.msra.mxu0 0.0
        %936 = vmatprep.subr.mxu0 0.0
        %937 = vmatpush2.xpose.msra.mxu0 0.0
        %938 = vmatprep.subr.mxu0 0.0
        %939 = vmatpush2.xpose.msra.mxu0 0.0
        %940 = vmatprep.subr.mxu0 0.0
        %941 = vmatpush2.xpose.msra.mxu0 0.0
        %942 = vmatprep.subr.mxu0 0.0
        %943 = vmatpush2.xpose.msra.mxu0 0.0
        %944 = vmatprep.subr.mxu0 0.0
        %945 = vmatpush2.xpose.msra.mxu0 0.0
        %946 = vmatprep.subr.mxu0 0.0
        %947 = vmatpush2.xpose.msra.mxu0 0.0
        %948 = vmatprep.subr.mxu0 0.0
        %949 = vmatpush2.xpose.msra.mxu0 0.0
        %950 = vmatprep.subr.mxu0 0.0
        %951 = vmatpush2.xpose.msra.mxu0 0.0
        %952 = vmatprep.subr.mxu0 0.0
        %953 = vmatpush2.xpose.msra.mxu0 0.0
        %954 = vmatprep.subr.mxu0 0.0
        %955 = vmatpush2.xpose.msra.mxu0 0.0
        %956 = vmatprep.subr.mxu0 0.0
        %957 = vmatpush2.xpose.msra.mxu0 0.0
        %958 = vmatprep.subr.mxu0 0.0
        %959 = vmatpush2.xpose.msra.mxu0 0.0
        %960 = vmatprep.subr.mxu0 0.0
        %961 = vmatpush2.xpose.msra.mxu0 0.0
        %962 = vmatprep.subr.mxu0 0.0
        %963 = vmatpush2.xpose.msra.mxu0 0.0
        %964 = vmatprep.subr.mxu0 0.0
        %965 = vmatpush2.xpose.msra.mxu0 0.0
        %966 = vmatprep.mubr.f32.mxu0 0.0
        %967 = vmatmul.mubr.f32.gmra.mxu0 %v891
        %v968 = vpop.f32.mrf.mxu0
        %v969 = vadd.f32 0.0, %v968
        %v970 = vpop.f32.mrf.mxu0
        %971 = vmatprep.mubr.f32.mxu0 0.0
        %972 = vmatmul.mubr.f32.gmra.mxu0 %v894
        %v973 = vpop.f32.mrf.mxu0
        %v974 = vadd.f32 0.0, %v973
        %v975 = vpop.f32.mrf.mxu0
        %976 = vdwg.mxu0
        %v978 = vsel %vm715, %v695, 0
        %v981 = vsel %vm715, %v696, 0
        %v984 = vsel %vm715, %v704, 0
        %v987 = vsel %vm715, %v705, 0
        %989 = vmatprep.subr.mxu0 0.0
        %990 = vmatpush1.xpose.msra.mxu0 0.0
        %991 = vmatprep.subr.mxu0 0.0
        %992 = vmatpush1.xpose.msra.mxu0 0.0
        %993 = vmatprep.subr.mxu0 0.0
        %994 = vmatpush1.xpose.msra.mxu0 0.0
        %995 = vmatprep.subr.mxu0 0.0
        %996 = vmatpush1.xpose.msra.mxu0 0.0
        %997 = vmatprep.subr.mxu0 0.0
        %998 = vmatpush1.xpose.msra.mxu0 0.0
        %999 = vmatprep.subr.mxu0 0.0
        %1000 = vmatpush1.xpose.msra.mxu0 0.0
        %1001 = vmatprep.subr.mxu0 0.0
        %1002 = vmatpush1.xpose.msra.mxu0 0.0
        %1003 = vmatprep.subr.mxu0 0.0
        %1004 = vmatpush1.xpose.msra.mxu0 0.0
        %1005 = vmatprep.subr.mxu0 0.0
        %1006 = vmatpush1.xpose.msra.mxu0 0.0
        %1007 = vmatprep.subr.mxu0 0.0
        %1008 = vmatpush1.xpose.msra.mxu0 0.0
        %1009 = vmatprep.subr.mxu0 0.0
        %1010 = vmatpush1.xpose.msra.mxu0 0.0
        %1011 = vmatprep.subr.mxu0 0.0
        %1012 = vmatpush1.xpose.msra.mxu0 0.0
        %1013 = vmatprep.subr.mxu0 0.0
        %1014 = vmatpush1.xpose.msra.mxu0 0.0
        %1015 = vmatprep.subr.mxu0 0.0
        %1016 = vmatpush1.xpose.msra.mxu0 0.0
        %1017 = vmatprep.subr.mxu0 0.0
        %1018 = vmatpush1.xpose.msra.mxu0 %v987
        %1019 = vmatprep.subr.mxu0 0.0
        %1020 = vmatpush1.xpose.msra.mxu0 %v984
        %1021 = vmatprep.subr.mxu0 0.0
        %1022 = vmatpush2.xpose.msra.mxu0 0.0
        %1023 = vmatprep.subr.mxu0 0.0
        %1024 = vmatpush2.xpose.msra.mxu0 0.0
        %1025 = vmatprep.subr.mxu0 0.0
        %1026 = vmatpush2.xpose.msra.mxu0 0.0
        %1027 = vmatprep.subr.mxu0 0.0
        %1028 = vmatpush2.xpose.msra.mxu0 0.0
        %1029 = vmatprep.subr.mxu0 0.0
        %1030 = vmatpush2.xpose.msra.mxu0 0.0
        %1031 = vmatprep.subr.mxu0 0.0
        %1032 = vmatpush2.xpose.msra.mxu0 0.0
        %1033 = vmatprep.subr.mxu0 0.0
        %1034 = vmatpush2.xpose.msra.mxu0 0.0
        %1035 = vmatprep.subr.mxu0 0.0
        %1036 = vmatpush2.xpose.msra.mxu0 0.0
        %1037 = vmatprep.subr.mxu0 0.0
        %1038 = vmatpush2.xpose.msra.mxu0 0.0
        %1039 = vmatprep.subr.mxu0 0.0
        %1040 = vmatpush2.xpose.msra.mxu0 0.0
        %1041 = vmatprep.subr.mxu0 0.0
        %1042 = vmatpush2.xpose.msra.mxu0 0.0
        %1043 = vmatprep.subr.mxu0 0.0
        %1044 = vmatpush2.xpose.msra.mxu0 0.0
        %1045 = vmatprep.subr.mxu0 0.0
        %1046 = vmatpush2.xpose.msra.mxu0 0.0
        %1047 = vmatprep.subr.mxu0 0.0
        %1048 = vmatpush2.xpose.msra.mxu0 0.0
        %1049 = vmatprep.subr.mxu0 0.0
        %1050 = vmatpush2.xpose.msra.mxu0 0.0
        %1051 = vmatprep.subr.mxu0 0.0
        %1052 = vmatpush2.xpose.msra.mxu0 0.0
        %1053 = vmatprep.mubr.f32.mxu0 0.0
        %1054 = vmatmul.mubr.f32.gmra.mxu0 %v978
        %v1055 = vpop.f32.mrf.mxu0
        %v1056 = vadd.f32 0.0, %v1055
        %v1057 = vpop.f32.mrf.mxu0
        %1058 = vmatprep.mubr.f32.mxu0 0.0
        %1059 = vmatmul.mubr.f32.gmra.mxu0 %v981
        %v1060 = vpop.f32.mrf.mxu0
        %v1061 = vadd.f32 0.0, %v1060
        %v1062 = vpop.f32.mrf.mxu0
        %1063 = vdwg.mxu0
        %v1064 = vmul.f32 %v795, 0.35355338
        %v1065 = vmul.f32 %v800, 0.35355338
        %v1066 = vmul.f32 %v882, 0.35355338
        %v1067 = vmul.f32 %v887, 0.35355338
        %v1068 = vmul.f32 %v969, 0.35355338
        %v1069 = vmul.f32 %v974, 0.35355338
        %v1070 = vmul.f32 %v1056, 0.35355338
        %v1071 = vmul.f32 %v1061, 0.35355338
        %v1072 = vld [vmem:[%s453] sm:$0xff]
        %v1073 = vld [vmem:[%s453 + $0x8] sm:$0xff]
        %v1074 = vld [vmem:[%s461] sm:$0xff]
        %v1075 = vld [vmem:[%s461 + $0x8] sm:$0xff]
        %v1076 = vmul.f32 %v1064, %v1074
        %v1077 = vmul.f32 %v1065, %v1075
        %v1078 = vmul.f32 %v1066, %v1074
        %v1079 = vmul.f32 %v1067, %v1075
        %v1080 = vmul.f32 %v1068, %v1074
        %v1081 = vmul.f32 %v1069, %v1075
        %v1082 = vmul.f32 %v1070, %v1074
        %v1083 = vmul.f32 %v1071, %v1075
        %v1084 = vadd.f32 %v1076, %v1072
        %v1085 = vadd.f32 %v1077, %v1073
        %v1086 = vadd.f32 %v1078, %v1072
        %v1087 = vadd.f32 %v1079, %v1073
        %v1088 = vadd.f32 %v1080, %v1072
        %v1089 = vadd.f32 %v1081, %v1073
        %v1090 = vadd.f32 %v1082, %v1072
        %v1091 = vadd.f32 %v1083, %v1073
        %v1092 = vld [vmem:[#allocation5] sm:$0xff]
        %v1093 = vld [vmem:[#allocation5 + $0x8] sm:$0xff]
        %v1094 = vld [vmem:[#allocation5 + $0x10] sm:$0xff]
        %v1095 = vld [vmem:[#allocation5 + $0x18] sm:$0xff]
        %v1096 = vld [vmem:[#allocation5 + $0x20] sm:$0xff]
        %v1097 = vld [vmem:[#allocation5 + $0x28] sm:$0xff]
        %v1098 = vld [vmem:[#allocation5 + $0x30] sm:$0xff]
        %v1099 = vld [vmem:[#allocation5 + $0x38] sm:$0xff]
        %vm1100 = vcmask 130048
        %v1101 = vsel %vm1100, %v1084, -inf
        %1102 = vmax.xlane.f32.xlu0 %v1101
        %v1103 = vpop.xlane.xlu0 %1102
        %v1104 = vsel %vm1100, %v1085, -inf
        %1105 = vmax.xlane.f32.xlu0 %v1104
        %v1106 = vpop.xlane.xlu0 %1105
        %v1107 = vsel %vm1100, %v1086, -inf
        %1108 = vmax.xlane.f32.xlu0 %v1107
        %v1109 = vpop.xlane.xlu0 %1108
        %v1110 = vsel %vm1100, %v1087, -inf
        %1111 = vmax.xlane.f32.xlu0 %v1110
        %v1112 = vpop.xlane.xlu0 %1111
        %v1113 = vsel %vm1100, %v1088, -inf
        %1114 = vmax.xlane.f32.xlu0 %v1113
        %v1115 = vpop.xlane.xlu0 %1114
        %v1116 = vsel %vm1100, %v1089, -inf
        %1117 = vmax.xlane.f32.xlu0 %v1116
        %v1118 = vpop.xlane.xlu0 %1117
        %v1119 = vsel %vm1100, %v1090, -inf
        %1120 = vmax.xlane.f32.xlu0 %v1119
        %v1121 = vpop.xlane.xlu0 %1120
        %v1122 = vsel %vm1100, %v1091, -inf
        %1123 = vmax.xlane.f32.xlu0 %v1122
        %v1124 = vpop.xlane.xlu0 %1123
        %v1125 = vmax.f32 %v1092, %v1103
        %v1126 = vmax.f32 %v1093, %v1106
        %v1127 = vmax.f32 %v1094, %v1109
        %v1128 = vmax.f32 %v1095, %v1112
        %v1129 = vmax.f32 %v1096, %v1115
        %v1130 = vmax.f32 %v1097, %v1118
        %v1131 = vmax.f32 %v1098, %v1121
        %v1132 = vmax.f32 %v1099, %v1124
        %v1133 = vsub.f32 %v1092, %v1125
        %v1134 = vsub.f32 %v1093, %v1126
        %v1135 = vsub.f32 %v1094, %v1127
        %v1136 = vsub.f32 %v1095, %v1128
        %v1137 = vsub.f32 %v1096, %v1129
        %v1138 = vsub.f32 %v1097, %v1130
        %v1139 = vsub.f32 %v1098, %v1131
        %v1140 = vsub.f32 %v1099, %v1132
        %v1141 = vmul.f32 %v1133, 1.442695
        %v1142 = vpow.pop %v1141
        %v1143 = vmul.f32 %v1134, 1.442695
        %v1144 = vpow.pop %v1143
        %v1145 = vmul.f32 %v1135, 1.442695
        %v1146 = vpow.pop %v1145
        %v1147 = vmul.f32 %v1136, 1.442695
        %v1148 = vpow.pop %v1147
        %v1149 = vmul.f32 %v1137, 1.442695
        %v1150 = vpow.pop %v1149
        %v1151 = vmul.f32 %v1138, 1.442695
        %v1152 = vpow.pop %v1151
        %v1153 = vmul.f32 %v1139, 1.442695
        %v1154 = vpow.pop %v1153
        %v1155 = vmul.f32 %v1140, 1.442695
        %v1156 = vpow.pop %v1155
        %1158 = vset.pattern.permute.xlu0 0
        %1159 = vperm.xlu0 %1158, %v1125
        %v1160 = vpop.permute.xlu0 %1159
        %1163 = vset.pattern.permute.xlu0 0
        %1164 = vperm.xlu0 %1163, %v1126
        %v1165 = vpop.permute.xlu0 %1164
        %1168 = vset.pattern.permute.xlu0 0
        %1169 = vperm.xlu0 %1168, %v1127
        %v1170 = vpop.permute.xlu0 %1169
        %1173 = vset.pattern.permute.xlu0 0
        %1174 = vperm.xlu0 %1173, %v1128
        %v1175 = vpop.permute.xlu0 %1174
        %1178 = vset.pattern.permute.xlu0 0
        %1179 = vperm.xlu0 %1178, %v1129
        %v1180 = vpop.permute.xlu0 %1179
        %1183 = vset.pattern.permute.xlu0 0
        %1184 = vperm.xlu0 %1183, %v1130
        %v1185 = vpop.permute.xlu0 %1184
        %1188 = vset.pattern.permute.xlu0 0
        %1189 = vperm.xlu0 %1188, %v1131
        %v1190 = vpop.permute.xlu0 %1189
        %1193 = vset.pattern.permute.xlu0 0
        %1194 = vperm.xlu0 %1193, %v1132
        %v1195 = vpop.permute.xlu0 %1194
        %v1197 = vsub.f32 %v1084, %v1160
        %v1198 = vsub.f32 %v1085, %v1165
        %v1199 = vsub.f32 %v1086, %v1170
        %v1200 = vsub.f32 %v1087, %v1175
        %v1201 = vsub.f32 %v1088, %v1180
        %v1202 = vsub.f32 %v1089, %v1185
        %v1203 = vsub.f32 %v1090, %v1190
        %v1204 = vsub.f32 %v1091, %v1195
        %v1205 = vmul.f32 %v1197, 1.442695
        %v1206 = vpow.pop %v1205
        %v1207 = vmul.f32 %v1198, 1.442695
        %v1208 = vpow.pop %v1207
        %v1209 = vmul.f32 %v1199, 1.442695
        %v1210 = vpow.pop %v1209
        %v1211 = vmul.f32 %v1200, 1.442695
        %v1212 = vpow.pop %v1211
        %v1213 = vmul.f32 %v1201, 1.442695
        %v1214 = vpow.pop %v1213
        %v1215 = vmul.f32 %v1202, 1.442695
        %v1216 = vpow.pop %v1215
        %v1217 = vmul.f32 %v1203, 1.442695
        %v1218 = vpow.pop %v1217
        %v1219 = vmul.f32 %v1204, 1.442695
        %v1220 = vpow.pop %v1219
        %v1221 = vld [vmem:[#allocation6] sm:$0xff]
        %v1222 = vld [vmem:[#allocation6 + $0x8] sm:$0xff]
        %v1223 = vld [vmem:[#allocation6 + $0x10] sm:$0xff]
        %v1224 = vld [vmem:[#allocation6 + $0x18] sm:$0xff]
        %v1225 = vld [vmem:[#allocation6 + $0x20] sm:$0xff]
        %v1226 = vld [vmem:[#allocation6 + $0x28] sm:$0xff]
        %v1227 = vld [vmem:[#allocation6 + $0x30] sm:$0xff]
        %v1228 = vld [vmem:[#allocation6 + $0x38] sm:$0xff]
        %v1229 = vmul.f32 %v1142, %v1221
        %v1230 = vmul.f32 %v1144, %v1222
        %v1231 = vmul.f32 %v1146, %v1223
        %v1232 = vmul.f32 %v1148, %v1224
        %v1233 = vmul.f32 %v1150, %v1225
        %v1234 = vmul.f32 %v1152, %v1226
        %v1235 = vmul.f32 %v1154, %v1227
        %v1236 = vmul.f32 %v1156, %v1228
        %v1237 = vsel %vm1100, %v1206, 0.0
        %1238 = vadd.xlane.f32.xlu0 %v1237
        %v1239 = vpop.xlane.xlu0 %1238
        %v1240 = vsel %vm1100, %v1208, 0.0
        %1241 = vadd.xlane.f32.xlu0 %v1240
        %v1242 = vpop.xlane.xlu0 %1241
        %v1243 = vsel %vm1100, %v1210, 0.0
        %1244 = vadd.xlane.f32.xlu0 %v1243
        %v1245 = vpop.xlane.xlu0 %1244
        %v1246 = vsel %vm1100, %v1212, 0.0
        %1247 = vadd.xlane.f32.xlu0 %v1246
        %v1248 = vpop.xlane.xlu0 %1247
        %v1249 = vsel %vm1100, %v1214, 0.0
        %1250 = vadd.xlane.f32.xlu0 %v1249
        %v1251 = vpop.xlane.xlu0 %1250
        %v1252 = vsel %vm1100, %v1216, 0.0
        %1253 = vadd.xlane.f32.xlu0 %v1252
        %v1254 = vpop.xlane.xlu0 %1253
        %v1255 = vsel %vm1100, %v1218, 0.0
        %1256 = vadd.xlane.f32.xlu0 %v1255
        %v1257 = vpop.xlane.xlu0 %1256
        %v1258 = vsel %vm1100, %v1220, 0.0
        %1259 = vadd.xlane.f32.xlu0 %v1258
        %v1260 = vpop.xlane.xlu0 %1259
        %v1261 = vadd.f32 %v1229, %v1239
        %v1262 = vadd.f32 %v1230, %v1242
        %v1263 = vadd.f32 %v1231, %v1245
        %v1264 = vadd.f32 %v1232, %v1248
        %v1265 = vadd.f32 %v1233, %v1251
        %v1266 = vadd.f32 %v1234, %v1254
        %v1267 = vadd.f32 %v1235, %v1257
        %v1268 = vadd.f32 %v1236, %v1260
        %vm1269 = vcmask 7168
        %1270 = vst.msk [vmem:[#allocation6] sm:$0xff] %vm1269, %v1261
        %1271 = vst.msk [vmem:[#allocation6 + $0x8] sm:$0xff] %vm1269, %v1262
        %1272 = vst.msk [vmem:[#allocation6 + $0x10] sm:$0xff] %vm1269, %v1263
        %1273 = vst.msk [vmem:[#allocation6 + $0x18] sm:$0xff] %vm1269, %v1264
        %1274 = vst.msk [vmem:[#allocation6 + $0x20] sm:$0xff] %vm1269, %v1265
        %1275 = vst.msk [vmem:[#allocation6 + $0x28] sm:$0xff] %vm1269, %v1266
        %1276 = vst.msk [vmem:[#allocation6 + $0x30] sm:$0xff] %vm1269, %v1267
        %1277 = vst.msk [vmem:[#allocation6 + $0x38] sm:$0xff] %vm1269, %v1268
        %v1279 = vsel %vm1100, %v1206, 0
        %v1282 = vsel %vm1100, %v1208, 0
        %1284 = vmatprep.subr.mxu0 0.0
        %1285 = vmatpush1.msra.mxu0 0.0
        %1286 = vmatprep.subr.mxu0 0.0
        %1287 = vmatpush1.msra.mxu0 0.0
        %1288 = vmatprep.subr.mxu0 0.0
        %1289 = vmatpush1.msra.mxu0 0.0
        %1290 = vmatprep.subr.mxu0 0.0
        %1291 = vmatpush1.msra.mxu0 0.0
        %1292 = vmatprep.subr.mxu0 0.0
        %1293 = vmatpush1.msra.mxu0 0.0
        %1294 = vmatprep.subr.mxu0 0.0
        %1295 = vmatpush1.msra.mxu0 0.0
        %1296 = vmatprep.subr.mxu0 0.0
        %1297 = vmatpush1.msra.mxu0 0.0
        %1298 = vmatprep.subr.mxu0 0.0
        %1299 = vmatpush1.msra.mxu0 0.0
        %1300 = vmatprep.subr.mxu0 0.0
        %1301 = vmatpush1.msra.mxu0 0.0
        %1302 = vmatprep.subr.mxu0 0.0
        %1303 = vmatpush1.msra.mxu0 0.0
        %1304 = vmatprep.subr.mxu0 0.0
        %1305 = vmatpush1.msra.mxu0 0.0
        %1306 = vmatprep.subr.mxu0 0.0
        %1307 = vmatpush1.msra.mxu0 0.0
        %1308 = vmatprep.subr.mxu0 0.0
        %1309 = vmatpush1.msra.mxu0 0.0
        %1310 = vmatprep.subr.mxu0 0.0
        %1311 = vmatpush1.msra.mxu0 0.0
        %1312 = vmatprep.subr.mxu0 0.0
        %1313 = vmatpush1.msra.mxu0 %v708
        %1314 = vmatprep.subr.mxu0 0.0
        %1315 = vmatpush1.msra.mxu0 %v707
        %1316 = vmatprep.subr.mxu0 0.0
        %1317 = vmatpush2.msra.mxu0 0.0
        %1318 = vmatprep.subr.mxu0 0.0
        %1319 = vmatpush2.msra.mxu0 0.0
        %1320 = vmatprep.subr.mxu0 0.0
        %1321 = vmatpush2.msra.mxu0 0.0
        %1322 = vmatprep.subr.mxu0 0.0
        %1323 = vmatpush2.msra.mxu0 0.0
        %1324 = vmatprep.subr.mxu0 0.0
        %1325 = vmatpush2.msra.mxu0 0.0
        %1326 = vmatprep.subr.mxu0 0.0
        %1327 = vmatpush2.msra.mxu0 0.0
        %1328 = vmatprep.subr.mxu0 0.0
        %1329 = vmatpush2.msra.mxu0 0.0
        %1330 = vmatprep.subr.mxu0 0.0
        %1331 = vmatpush2.msra.mxu0 0.0
        %1332 = vmatprep.subr.mxu0 0.0
        %1333 = vmatpush2.msra.mxu0 0.0
        %1334 = vmatprep.subr.mxu0 0.0
        %1335 = vmatpush2.msra.mxu0 0.0
        %1336 = vmatprep.subr.mxu0 0.0
        %1337 = vmatpush2.msra.mxu0 0.0
        %1338 = vmatprep.subr.mxu0 0.0
        %1339 = vmatpush2.msra.mxu0 0.0
        %1340 = vmatprep.subr.mxu0 0.0
        %1341 = vmatpush2.msra.mxu0 0.0
        %1342 = vmatprep.subr.mxu0 0.0
        %1343 = vmatpush2.msra.mxu0 0.0
        %1344 = vmatprep.subr.mxu0 0.0
        %1345 = vmatpush2.msra.mxu0 0.0
        %1346 = vmatprep.subr.mxu0 0.0
        %1347 = vmatpush2.msra.mxu0 0.0
        %1348 = vmatprep.mubr.f32.mxu0 0.0
        %1349 = vmatmul.mubr.f32.gmra.mxu0 %v1279
        %v1350 = vpop.f32.mrf.mxu0
        %v1351 = vadd.f32 0.0, %v1350
        %v1352 = vpop.f32.mrf.mxu0
        %1353 = vmatprep.mubr.f32.mxu0 0.0
        %1354 = vmatmul.mubr.f32.gmra.mxu0 %v1282
        %v1355 = vpop.f32.mrf.mxu0
        %v1356 = vadd.f32 0.0, %v1355
        %v1357 = vpop.f32.mrf.mxu0
        %1358 = vdwg.mxu0
        %v1360 = vsel %vm1100, %v1210, 0
        %v1363 = vsel %vm1100, %v1212, 0
        %1365 = vmatprep.subr.mxu0 0.0
        %1366 = vmatpush1.msra.mxu0 0.0
        %1367 = vmatprep.subr.mxu0 0.0
        %1368 = vmatpush1.msra.mxu0 0.0
        %1369 = vmatprep.subr.mxu0 0.0
        %1370 = vmatpush1.msra.mxu0 0.0
        %1371 = vmatprep.subr.mxu0 0.0
        %1372 = vmatpush1.msra.mxu0 0.0
        %1373 = vmatprep.subr.mxu0 0.0
        %1374 = vmatpush1.msra.mxu0 0.0
        %1375 = vmatprep.subr.mxu0 0.0
        %1376 = vmatpush1.msra.mxu0 0.0
        %1377 = vmatprep.subr.mxu0 0.0
        %1378 = vmatpush1.msra.mxu0 0.0
        %1379 = vmatprep.subr.mxu0 0.0
        %1380 = vmatpush1.msra.mxu0 0.0
        %1381 = vmatprep.subr.mxu0 0.0
        %1382 = vmatpush1.msra.mxu0 0.0
        %1383 = vmatprep.subr.mxu0 0.0
        %1384 = vmatpush1.msra.mxu0 0.0
        %1385 = vmatprep.subr.mxu0 0.0
        %1386 = vmatpush1.msra.mxu0 0.0
        %1387 = vmatprep.subr.mxu0 0.0
        %1388 = vmatpush1.msra.mxu0 0.0
        %1389 = vmatprep.subr.mxu0 0.0
        %1390 = vmatpush1.msra.mxu0 0.0
        %1391 = vmatprep.subr.mxu0 0.0
        %1392 = vmatpush1.msra.mxu0 0.0
        %1393 = vmatprep.subr.mxu0 0.0
        %1394 = vmatpush1.msra.mxu0 %v710
        %1395 = vmatprep.subr.mxu0 0.0
        %1396 = vmatpush1.msra.mxu0 %v709
        %1397 = vmatprep.subr.mxu0 0.0
        %1398 = vmatpush2.msra.mxu0 0.0
        %1399 = vmatprep.subr.mxu0 0.0
        %1400 = vmatpush2.msra.mxu0 0.0
        %1401 = vmatprep.subr.mxu0 0.0
        %1402 = vmatpush2.msra.mxu0 0.0
        %1403 = vmatprep.subr.mxu0 0.0
        %1404 = vmatpush2.msra.mxu0 0.0
        %1405 = vmatprep.subr.mxu0 0.0
        %1406 = vmatpush2.msra.mxu0 0.0
        %1407 = vmatprep.subr.mxu0 0.0
        %1408 = vmatpush2.msra.mxu0 0.0
        %1409 = vmatprep.subr.mxu0 0.0
        %1410 = vmatpush2.msra.mxu0 0.0
        %1411 = vmatprep.subr.mxu0 0.0
        %1412 = vmatpush2.msra.mxu0 0.0
        %1413 = vmatprep.subr.mxu0 0.0
        %1414 = vmatpush2.msra.mxu0 0.0
        %1415 = vmatprep.subr.mxu0 0.0
        %1416 = vmatpush2.msra.mxu0 0.0
        %1417 = vmatprep.subr.mxu0 0.0
        %1418 = vmatpush2.msra.mxu0 0.0
        %1419 = vmatprep.subr.mxu0 0.0
        %1420 = vmatpush2.msra.mxu0 0.0
        %1421 = vmatprep.subr.mxu0 0.0
        %1422 = vmatpush2.msra.mxu0 0.0
        %1423 = vmatprep.subr.mxu0 0.0
        %1424 = vmatpush2.msra.mxu0 0.0
        %1425 = vmatprep.subr.mxu0 0.0
        %1426 = vmatpush2.msra.mxu0 0.0
        %1427 = vmatprep.subr.mxu0 0.0
        %1428 = vmatpush2.msra.mxu0 0.0
        %1429 = vmatprep.mubr.f32.mxu0 0.0
        %1430 = vmatmul.mubr.f32.gmra.mxu0 %v1360
        %v1431 = vpop.f32.mrf.mxu0
        %v1432 = vadd.f32 0.0, %v1431
        %v1433 = vpop.f32.mrf.mxu0
        %1434 = vmatprep.mubr.f32.mxu0 0.0
        %1435 = vmatmul.mubr.f32.gmra.mxu0 %v1363
        %v1436 = vpop.f32.mrf.mxu0
        %v1437 = vadd.f32 0.0, %v1436
        %v1438 = vpop.f32.mrf.mxu0
        %1439 = vdwg.mxu0
        %v1441 = vsel %vm1100, %v1214, 0
        %v1444 = vsel %vm1100, %v1216, 0
        %1446 = vmatprep.subr.mxu0 0.0
        %1447 = vmatpush1.msra.mxu0 0.0
        %1448 = vmatprep.subr.mxu0 0.0
        %1449 = vmatpush1.msra.mxu0 0.0
        %1450 = vmatprep.subr.mxu0 0.0
        %1451 = vmatpush1.msra.mxu0 0.0
        %1452 = vmatprep.subr.mxu0 0.0
        %1453 = vmatpush1.msra.mxu0 0.0
        %1454 = vmatprep.subr.mxu0 0.0
        %1455 = vmatpush1.msra.mxu0 0.0
        %1456 = vmatprep.subr.mxu0 0.0
        %1457 = vmatpush1.msra.mxu0 0.0
        %1458 = vmatprep.subr.mxu0 0.0
        %1459 = vmatpush1.msra.mxu0 0.0
        %1460 = vmatprep.subr.mxu0 0.0
        %1461 = vmatpush1.msra.mxu0 0.0
        %1462 = vmatprep.subr.mxu0 0.0
        %1463 = vmatpush1.msra.mxu0 0.0
        %1464 = vmatprep.subr.mxu0 0.0
        %1465 = vmatpush1.msra.mxu0 0.0
        %1466 = vmatprep.subr.mxu0 0.0
        %1467 = vmatpush1.msra.mxu0 0.0
        %1468 = vmatprep.subr.mxu0 0.0
        %1469 = vmatpush1.msra.mxu0 0.0
        %1470 = vmatprep.subr.mxu0 0.0
        %1471 = vmatpush1.msra.mxu0 0.0
        %1472 = vmatprep.subr.mxu0 0.0
        %1473 = vmatpush1.msra.mxu0 0.0
        %1474 = vmatprep.subr.mxu0 0.0
        %1475 = vmatpush1.msra.mxu0 %v712
        %1476 = vmatprep.subr.mxu0 0.0
        %1477 = vmatpush1.msra.mxu0 %v711
        %1478 = vmatprep.subr.mxu0 0.0
        %1479 = vmatpush2.msra.mxu0 0.0
        %1480 = vmatprep.subr.mxu0 0.0
        %1481 = vmatpush2.msra.mxu0 0.0
        %1482 = vmatprep.subr.mxu0 0.0
        %1483 = vmatpush2.msra.mxu0 0.0
        %1484 = vmatprep.subr.mxu0 0.0
        %1485 = vmatpush2.msra.mxu0 0.0
        %1486 = vmatprep.subr.mxu0 0.0
        %1487 = vmatpush2.msra.mxu0 0.0
        %1488 = vmatprep.subr.mxu0 0.0
        %1489 = vmatpush2.msra.mxu0 0.0
        %1490 = vmatprep.subr.mxu0 0.0
        %1491 = vmatpush2.msra.mxu0 0.0
        %1492 = vmatprep.subr.mxu0 0.0
        %1493 = vmatpush2.msra.mxu0 0.0
        %1494 = vmatprep.subr.mxu0 0.0
        %1495 = vmatpush2.msra.mxu0 0.0
        %1496 = vmatprep.subr.mxu0 0.0
        %1497 = vmatpush2.msra.mxu0 0.0
        %1498 = vmatprep.subr.mxu0 0.0
        %1499 = vmatpush2.msra.mxu0 0.0
        %1500 = vmatprep.subr.mxu0 0.0
        %1501 = vmatpush2.msra.mxu0 0.0
        %1502 = vmatprep.subr.mxu0 0.0
        %1503 = vmatpush2.msra.mxu0 0.0
        %1504 = vmatprep.subr.mxu0 0.0
        %1505 = vmatpush2.msra.mxu0 0.0
        %1506 = vmatprep.subr.mxu0 0.0
        %1507 = vmatpush2.msra.mxu0 0.0
        %1508 = vmatprep.subr.mxu0 0.0
        %1509 = vmatpush2.msra.mxu0 0.0
        %1510 = vmatprep.mubr.f32.mxu0 0.0
        %1511 = vmatmul.mubr.f32.gmra.mxu0 %v1441
        %v1512 = vpop.f32.mrf.mxu0
        %v1513 = vadd.f32 0.0, %v1512
        %v1514 = vpop.f32.mrf.mxu0
        %1515 = vmatprep.mubr.f32.mxu0 0.0
        %1516 = vmatmul.mubr.f32.gmra.mxu0 %v1444
        %v1517 = vpop.f32.mrf.mxu0
        %v1518 = vadd.f32 0.0, %v1517
        %v1519 = vpop.f32.mrf.mxu0
        %1520 = vdwg.mxu0
        %v1522 = vsel %vm1100, %v1218, 0
        %v1525 = vsel %vm1100, %v1220, 0
        %1527 = vmatprep.subr.mxu0 0.0
        %1528 = vmatpush1.msra.mxu0 0.0
        %1529 = vmatprep.subr.mxu0 0.0
        %1530 = vmatpush1.msra.mxu0 0.0
        %1531 = vmatprep.subr.mxu0 0.0
        %1532 = vmatpush1.msra.mxu0 0.0
        %1533 = vmatprep.subr.mxu0 0.0
        %1534 = vmatpush1.msra.mxu0 0.0
        %1535 = vmatprep.subr.mxu0 0.0
        %1536 = vmatpush1.msra.mxu0 0.0
        %1537 = vmatprep.subr.mxu0 0.0
        %1538 = vmatpush1.msra.mxu0 0.0
        %1539 = vmatprep.subr.mxu0 0.0
        %1540 = vmatpush1.msra.mxu0 0.0
        %1541 = vmatprep.subr.mxu0 0.0
        %1542 = vmatpush1.msra.mxu0 0.0
        %1543 = vmatprep.subr.mxu0 0.0
        %1544 = vmatpush1.msra.mxu0 0.0
        %1545 = vmatprep.subr.mxu0 0.0
        %1546 = vmatpush1.msra.mxu0 0.0
        %1547 = vmatprep.subr.mxu0 0.0
        %1548 = vmatpush1.msra.mxu0 0.0
        %1549 = vmatprep.subr.mxu0 0.0
        %1550 = vmatpush1.msra.mxu0 0.0
        %1551 = vmatprep.subr.mxu0 0.0
        %1552 = vmatpush1.msra.mxu0 0.0
        %1553 = vmatprep.subr.mxu0 0.0
        %1554 = vmatpush1.msra.mxu0 0.0
        %1555 = vmatprep.subr.mxu0 0.0
        %1556 = vmatpush1.msra.mxu0 %v714
        %1557 = vmatprep.subr.mxu0 0.0
        %1558 = vmatpush1.msra.mxu0 %v713
        %1559 = vmatprep.subr.mxu0 0.0
        %1560 = vmatpush2.msra.mxu0 0.0
        %1561 = vmatprep.subr.mxu0 0.0
        %1562 = vmatpush2.msra.mxu0 0.0
        %1563 = vmatprep.subr.mxu0 0.0
        %1564 = vmatpush2.msra.mxu0 0.0
        %1565 = vmatprep.subr.mxu0 0.0
        %1566 = vmatpush2.msra.mxu0 0.0
        %1567 = vmatprep.subr.mxu0 0.0
        %1568 = vmatpush2.msra.mxu0 0.0
        %1569 = vmatprep.subr.mxu0 0.0
        %1570 = vmatpush2.msra.mxu0 0.0
        %1571 = vmatprep.subr.mxu0 0.0
        %1572 = vmatpush2.msra.mxu0 0.0
        %1573 = vmatprep.subr.mxu0 0.0
        %1574 = vmatpush2.msra.mxu0 0.0
        %1575 = vmatprep.subr.mxu0 0.0
        %1576 = vmatpush2.msra.mxu0 0.0
        %1577 = vmatprep.subr.mxu0 0.0
        %1578 = vmatpush2.msra.mxu0 0.0
        %1579 = vmatprep.subr.mxu0 0.0
        %1580 = vmatpush2.msra.mxu0 0.0
        %1581 = vmatprep.subr.mxu0 0.0
        %1582 = vmatpush2.msra.mxu0 0.0
        %1583 = vmatprep.subr.mxu0 0.0
        %1584 = vmatpush2.msra.mxu0 0.0
        %1585 = vmatprep.subr.mxu0 0.0
        %1586 = vmatpush2.msra.mxu0 0.0
        %1587 = vmatprep.subr.mxu0 0.0
        %1588 = vmatpush2.msra.mxu0 0.0
        %1589 = vmatprep.subr.mxu0 0.0
        %1590 = vmatpush2.msra.mxu0 0.0
        %1591 = vmatprep.mubr.f32.mxu0 0.0
        %1592 = vmatmul.mubr.f32.gmra.mxu0 %v1522
        %v1593 = vpop.f32.mrf.mxu0
        %v1594 = vadd.f32 0.0, %v1593
        %v1595 = vpop.f32.mrf.mxu0
        %1596 = vmatprep.mubr.f32.mxu0 0.0
        %1597 = vmatmul.mubr.f32.gmra.mxu0 %v1525
        %v1598 = vpop.f32.mrf.mxu0
        %v1599 = vadd.f32 0.0, %v1598
        %v1600 = vpop.f32.mrf.mxu0
        %1601 = vdwg.mxu0
        %v1602 = vld [vmem:[#allocation7] sm:$0xff]
        %v1603 = vld [vmem:[#allocation7 + $0x8] sm:$0xff]
        %v1604 = vld [vmem:[#allocation7 + $0x10] sm:$0xff]
        %v1605 = vld [vmem:[#allocation7 + $0x18] sm:$0xff]
        %v1606 = vld [vmem:[#allocation7 + $0x20] sm:$0xff]
        %v1607 = vld [vmem:[#allocation7 + $0x28] sm:$0xff]
        %v1608 = vld [vmem:[#allocation7 + $0x30] sm:$0xff]
        %v1609 = vld [vmem:[#allocation7 + $0x38] sm:$0xff]
        %1611 = vset.pattern.permute.xlu0 0
        %1612 = vperm.xlu0 %1611, %v1142
        %v1613 = vpop.permute.xlu0 %1612
        %1616 = vset.pattern.permute.xlu0 0
        %1617 = vperm.xlu0 %1616, %v1144
        %v1618 = vpop.permute.xlu0 %1617
        %1621 = vset.pattern.permute.xlu0 0
        %1622 = vperm.xlu0 %1621, %v1146
        %v1623 = vpop.permute.xlu0 %1622
        %1626 = vset.pattern.permute.xlu0 0
        %1627 = vperm.xlu0 %1626, %v1148
        %v1628 = vpop.permute.xlu0 %1627
        %1631 = vset.pattern.permute.xlu0 0
        %1632 = vperm.xlu0 %1631, %v1150
        %v1633 = vpop.permute.xlu0 %1632
        %1636 = vset.pattern.permute.xlu0 0
        %1637 = vperm.xlu0 %1636, %v1152
        %v1638 = vpop.permute.xlu0 %1637
        %1641 = vset.pattern.permute.xlu0 0
        %1642 = vperm.xlu0 %1641, %v1154
        %v1643 = vpop.permute.xlu0 %1642
        %1646 = vset.pattern.permute.xlu0 0
        %1647 = vperm.xlu0 %1646, %v1156
        %v1648 = vpop.permute.xlu0 %1647
        %v1650 = vmul.f32 %v1613, %v1602
        %v1651 = vmul.f32 %v1618, %v1603
        %v1652 = vmul.f32 %v1623, %v1604
        %v1653 = vmul.f32 %v1628, %v1605
        %v1654 = vmul.f32 %v1633, %v1606
        %v1655 = vmul.f32 %v1638, %v1607
        %v1656 = vmul.f32 %v1643, %v1608
        %v1657 = vmul.f32 %v1648, %v1609
        %v1658 = vadd.f32 %v1650, %v1351
        %v1659 = vadd.f32 %v1651, %v1356
        %v1660 = vadd.f32 %v1652, %v1432
        %v1661 = vadd.f32 %v1653, %v1437
        %v1662 = vadd.f32 %v1654, %v1513
        %v1663 = vadd.f32 %v1655, %v1518
        %v1664 = vadd.f32 %v1656, %v1594
        %v1665 = vadd.f32 %v1657, %v1599
        %1666 = vst.msk [vmem:[#allocation7] sm:$0xff] %vm715, %v1658
        %1667 = vst.msk [vmem:[#allocation7 + $0x8] sm:$0xff] %vm715, %v1659
        %1668 = vst.msk [vmem:[#allocation7 + $0x10] sm:$0xff] %vm715, %v1660
        %1669 = vst.msk [vmem:[#allocation7 + $0x18] sm:$0xff] %vm715, %v1661
        %1670 = vst.msk [vmem:[#allocation7 + $0x20] sm:$0xff] %vm715, %v1662
        %1671 = vst.msk [vmem:[#allocation7 + $0x28] sm:$0xff] %vm715, %v1663
        %1672 = vst.msk [vmem:[#allocation7 + $0x30] sm:$0xff] %vm715, %v1664
        %1673 = vst.msk [vmem:[#allocation7 + $0x38] sm:$0xff] %vm715, %v1665
        %1674 = vst.msk [vmem:[#allocation5] sm:$0xff] %vm1269, %v1125
        %1675 = vst.msk [vmem:[#allocation5 + $0x8] sm:$0xff] %vm1269, %v1126
        %1676 = vst.msk [vmem:[#allocation5 + $0x10] sm:$0xff] %vm1269, %v1127
        %1677 = vst.msk [vmem:[#allocation5 + $0x18] sm:$0xff] %vm1269, %v1128
        %1678 = vst.msk [vmem:[#allocation5 + $0x20] sm:$0xff] %vm1269, %v1129
        %1679 = vst.msk [vmem:[#allocation5 + $0x28] sm:$0xff] %vm1269, %v1130
        %1680 = vst.msk [vmem:[#allocation5 + $0x30] sm:$0xff] %vm1269, %v1131
        %1681 = vst.msk [vmem:[#allocation5 + $0x38] sm:$0xff] %vm1269, %v1132
        // Predicated region
        $region73: #{encoder_layer_forward.1} parent=59 // pred_check
          %p1682 = pneg %p462
        $region74: #{encoder_layer_forward.1} parent=59 // pred_check_branch
          %1684 = sbr.rel (%p1682) target = $region76
        $region75: #{encoder_layer_forward.1} parent=59 // pred_region
          %v1685 = vld [vmem:[%s9] sm:$0x1]
          %v1686 = vld [vmem:[%s9 + $0x1] sm:$0x1]
          %v1687 = vld [vmem:[%s9 + $0x2] sm:$0x1]
          %v1688 = vld [vmem:[%s9 + $0x3] sm:$0x1]
          %v1689 = vld [vmem:[%s9 + $0x4] sm:$0x1]
          %v1690 = vld [vmem:[%s9 + $0x5] sm:$0x1]
          %v1691 = vld [vmem:[#allocation6] sm:$0xff]
          %v1692 = vld [vmem:[#allocation6 + $0x8] sm:$0xff]
          %v1693 = vld [vmem:[#allocation6 + $0x10] sm:$0xff]
          %v1694 = vld [vmem:[#allocation6 + $0x18] sm:$0xff]
          %v1695 = vld [vmem:[#allocation6 + $0x20] sm:$0xff]
          %v1696 = vld [vmem:[#allocation6 + $0x28] sm:$0xff]
          %v1697 = vld [vmem:[#allocation6 + $0x30] sm:$0xff]
          %v1698 = vld [vmem:[#allocation6 + $0x38] sm:$0xff]
          %v1699 = vrcp.pop %v1691
          %v1700 = vmul.f32 1.0, %v1699
          %v1701 = vrcp.pop %v1692
          %v1702 = vmul.f32 1.0, %v1701
          %v1703 = vrcp.pop %v1693
          %v1704 = vmul.f32 1.0, %v1703
          %v1705 = vrcp.pop %v1694
          %v1706 = vmul.f32 1.0, %v1705
          %v1707 = vrcp.pop %v1695
          %v1708 = vmul.f32 1.0, %v1707
          %v1709 = vrcp.pop %v1696
          %v1710 = vmul.f32 1.0, %v1709
          %v1711 = vrcp.pop %v1697
          %v1712 = vmul.f32 1.0, %v1711
          %v1713 = vrcp.pop %v1698
          %v1714 = vmul.f32 1.0, %v1713
          %v1715 = vld [vmem:[#allocation7] sm:$0xff]
          %v1716 = vld [vmem:[#allocation7 + $0x8] sm:$0xff]
          %v1717 = vld [vmem:[#allocation7 + $0x10] sm:$0xff]
          %v1718 = vld [vmem:[#allocation7 + $0x18] sm:$0xff]
          %v1719 = vld [vmem:[#allocation7 + $0x20] sm:$0xff]
          %v1720 = vld [vmem:[#allocation7 + $0x28] sm:$0xff]
          %v1721 = vld [vmem:[#allocation7 + $0x30] sm:$0xff]
          %v1722 = vld [vmem:[#allocation7 + $0x38] sm:$0xff]
          %1724 = vset.pattern.permute.xlu0 0
          %1725 = vperm.xlu0 %1724, %v1700
          %v1726 = vpop.permute.xlu0 %1725
          %1729 = vset.pattern.permute.xlu0 0
          %1730 = vperm.xlu0 %1729, %v1702
          %v1731 = vpop.permute.xlu0 %1730
          %1734 = vset.pattern.permute.xlu0 0
          %1735 = vperm.xlu0 %1734, %v1704
          %v1736 = vpop.permute.xlu0 %1735
          %1739 = vset.pattern.permute.xlu0 0
          %1740 = vperm.xlu0 %1739, %v1706
          %v1741 = vpop.permute.xlu0 %1740
          %1744 = vset.pattern.permute.xlu0 0
          %1745 = vperm.xlu0 %1744, %v1708
          %v1746 = vpop.permute.xlu0 %1745
          %1749 = vset.pattern.permute.xlu0 0
          %1750 = vperm.xlu0 %1749, %v1710
          %v1751 = vpop.permute.xlu0 %1750
          %1754 = vset.pattern.permute.xlu0 0
          %1755 = vperm.xlu0 %1754, %v1712
          %v1756 = vpop.permute.xlu0 %1755
          %1759 = vset.pattern.permute.xlu0 0
          %1760 = vperm.xlu0 %1759, %v1714
          %v1761 = vpop.permute.xlu0 %1760
          %v1763 = vmul.f32 %v1715, %v1726
          %v1764 = vmul.f32 %v1716, %v1731
          %v1765 = vmul.f32 %v1717, %v1736
          %v1766 = vmul.f32 %v1718, %v1741
          %v1767 = vmul.f32 %v1719, %v1746
          %v1768 = vmul.f32 %v1720, %v1751
          %v1769 = vmul.f32 %v1721, %v1756
          %v1770 = vmul.f32 %v1722, %v1761
          %1771 = vst.msk [vmem:[#allocation8] sm:$0xff] %vm715, %v1763
          %1772 = vst.msk [vmem:[#allocation8 + $0x8] sm:$0xff] %vm715, %v1764
          %1775 = vrot.lane.b32.xlu0 %v1765, 8
          %v1776 = vpop.permute.xlu0 %1775
          %1777 = vrot.lane.b32.xlu0 %v1766, 8
          %v1778 = vpop.permute.xlu0 %1777
          %vm1781 = vcmask 130112
          %1782 = vst.msk [vmem:[#allocation8] sm:$0xff] %vm1781, %v1776
          %1783 = vst.msk [vmem:[#allocation8 + $0x8] sm:$0xff] %vm1781, %v1778
          %1786 = vrot.lane.b32.xlu0 %v1767, 16
          %v1787 = vpop.permute.xlu0 %1786
          %1788 = vrot.lane.b32.xlu0 %v1768, 16
          %v1789 = vpop.permute.xlu0 %1788
          %vm1792 = vcmask 195712
          %1793 = vst.msk [vmem:[#allocation8] sm:$0xff] %vm1792, %v1787
          %1794 = vst.msk [vmem:[#allocation8 + $0x8] sm:$0xff] %vm1792, %v1789
          %1797 = vrot.lane.b32.xlu0 %v1769, 24
          %v1798 = vpop.permute.xlu0 %1797
          %1799 = vrot.lane.b32.xlu0 %v1770, 24
          %v1800 = vpop.permute.xlu0 %1799
          %vm1803 = vcmask 261312
          %1804 = vst.msk [vmem:[#allocation8] sm:$0xff] %vm1803, %v1798
          %1805 = vst.msk [vmem:[#allocation8 + $0x8] sm:$0xff] %vm1803, %v1800
          %v1806 = vld [vmem:[%s445] sm:$0xff]
          %v1807 = vld [vmem:[%s445 + $0x8] sm:$0xff]
          %v1808 = vld [vmem:[#allocation8] sm:$0xff]
          %v1809 = vld [vmem:[#allocation8 + $0x8] sm:$0xff]
          %v1810 = vld [vmem:[%s5] sm:$0xff]
          %v1811 = vld [vmem:[%s5 + $0x8] sm:$0xff]
          %v1812 = vld [vmem:[%s5 + $0x10] sm:$0xff]
          %v1813 = vld [vmem:[%s5 + $0x18] sm:$0xff]
          %v1814 = vlaneseq
          %v1815 = vshrl.u32 %v1814, 7
          %v1816 = vsub.s32 0, %v1815
          %v1817 = vrot.slane %v1685, %v1816
          %vm1818 = vcmask 261120
          %v1820 = vsel %vm1818, %v1808, 0
          %v1823 = vsel %vm1818, %v1809, 0
          %1825 = vmatprep.subr.mxu0 0.0
          %1826 = vmatpush1.msra.mxu0 0.0
          %1827 = vmatprep.subr.mxu0 0.0
          %1828 = vmatpush1.msra.mxu0 0.0
          %1829 = vmatprep.subr.mxu0 0.0
          %1830 = vmatpush1.msra.mxu0 0.0
          %1831 = vmatprep.subr.mxu0 0.0
          %1832 = vmatpush1.msra.mxu0 0.0
          %1833 = vmatprep.subr.mxu0 0.0
          %1834 = vmatpush1.msra.mxu0 0.0
          %1835 = vmatprep.subr.mxu0 0.0
          %1836 = vmatpush1.msra.mxu0 0.0
          %1837 = vmatprep.subr.mxu0 0.0
          %1838 = vmatpush1.msra.mxu0 0.0
          %1839 = vmatprep.subr.mxu0 0.0
          %1840 = vmatpush1.msra.mxu0 0.0
          %1841 = vmatprep.subr.mxu0 0.0
          %1842 = vmatpush1.msra.mxu0 0.0
          %1843 = vmatprep.subr.mxu0 0.0
          %1844 = vmatpush1.msra.mxu0 0.0
          %1845 = vmatprep.subr.mxu0 0.0
          %1846 = vmatpush1.msra.mxu0 0.0
          %1847 = vmatprep.subr.mxu0 0.0
          %1848 = vmatpush1.msra.mxu0 0.0
          %1849 = vmatprep.subr.mxu0 0.0
          %1850 = vmatpush1.msra.mxu0 %v1813
          %1851 = vmatprep.subr.mxu0 0.0
          %1852 = vmatpush1.msra.mxu0 %v1812
          %1853 = vmatprep.subr.mxu0 0.0
          %1854 = vmatpush1.msra.mxu0 %v1811
          %1855 = vmatprep.subr.mxu0 0.0
          %1856 = vmatpush1.msra.mxu0 %v1810
          %1857 = vmatprep.subr.mxu0 0.0
          %1858 = vmatpush2.msra.mxu0 0.0
          %1859 = vmatprep.subr.mxu0 0.0
          %1860 = vmatpush2.msra.mxu0 0.0
          %1861 = vmatprep.subr.mxu0 0.0
          %1862 = vmatpush2.msra.mxu0 0.0
          %1863 = vmatprep.subr.mxu0 0.0
          %1864 = vmatpush2.msra.mxu0 0.0
          %1865 = vmatprep.subr.mxu0 0.0
          %1866 = vmatpush2.msra.mxu0 0.0
          %1867 = vmatprep.subr.mxu0 0.0
          %1868 = vmatpush2.msra.mxu0 0.0
          %1869 = vmatprep.subr.mxu0 0.0
          %1870 = vmatpush2.msra.mxu0 0.0
          %1871 = vmatprep.subr.mxu0 0.0
          %1872 = vmatpush2.msra.mxu0 0.0
          %1873 = vmatprep.subr.mxu0 0.0
          %1874 = vmatpush2.msra.mxu0 0.0
          %1875 = vmatprep.subr.mxu0 0.0
          %1876 = vmatpush2.msra.mxu0 0.0
          %1877 = vmatprep.subr.mxu0 0.0
          %1878 = vmatpush2.msra.mxu0 0.0
          %1879 = vmatprep.subr.mxu0 0.0
          %1880 = vmatpush2.msra.mxu0 0.0
          %1881 = vmatprep.subr.mxu0 0.0
          %1882 = vmatpush2.msra.mxu0 0.0
          %1883 = vmatprep.subr.mxu0 0.0
          %1884 = vmatpush2.msra.mxu0 0.0
          %1885 = vmatprep.subr.mxu0 0.0
          %1886 = vmatpush2.msra.mxu0 0.0
          %1887 = vmatprep.subr.mxu0 0.0
          %1888 = vmatpush2.msra.mxu0 0.0
          %1889 = vmatprep.mubr.f32.mxu0 0.0
          %1890 = vmatmul.mubr.f32.gmra.mxu0 %v1820
          %v1891 = vpop.f32.mrf.mxu0
          %v1892 = vadd.f32 %v1817, %v1891
          %v1893 = vpop.f32.mrf.mxu0
          %1894 = vmatprep.mubr.f32.mxu0 0.0
          %1895 = vmatmul.mubr.f32.gmra.mxu0 %v1823
          %v1896 = vpop.f32.mrf.mxu0
          %v1897 = vadd.f32 %v1817, %v1896
          %v1898 = vpop.f32.mrf.mxu0
          %1899 = vdwg.mxu0
          %v1900 = vadd.f32 %v1892, %v1806
          %v1901 = vadd.f32 %v1897, %v1807
          %v1902 = vsel %vm1818, %v1900, 0.0
          %1903 = vadd.xlane.f32.xlu0 %v1902
          %v1904 = vpop.xlane.xlu0 %1903
          %v1905 = vsel %vm1818, %v1901, 0.0
          %1906 = vadd.xlane.f32.xlu0 %v1905
          %v1907 = vpop.xlane.xlu0 %1906
          %v1908 = vrcp.pop 32.0
          %v1909 = vmul.f32 %v1904, %v1908
          %v1910 = vmul.f32 %v1907, %v1908
          %v1911 = vsub.f32 %v1900, %v1909
          %v1912 = vsub.f32 %v1901, %v1910
          %v1913 = vmul.f32 %v1911, %v1911
          %v1914 = vmul.f32 %v1912, %v1912
          %v1915 = vsel %vm1818, %v1913, 0.0
          %1916 = vadd.xlane.f32.xlu0 %v1915
          %v1917 = vpop.xlane.xlu0 %1916
          %v1918 = vsel %vm1818, %v1914, 0.0
          %1919 = vadd.xlane.f32.xlu0 %v1918
          %v1920 = vpop.xlane.xlu0 %1919
          %v1921 = vmul.f32 %v1917, %v1908
          %v1922 = vmul.f32 %v1920, %v1908
          %v1923 = vadd.f32 %v1921, 1e-05
          %v1924 = vadd.f32 %v1922, 1e-05
          %v1925 = vrsqrt.pop %v1923
          %v1926 = vrsqrt.pop %v1924
          %v1927 = vmul.f32 %v1911, %v1925
          %v1928 = vmul.f32 %v1912, %v1926
          %v1929 = vlaneseq
          %v1930 = vshrl.u32 %v1929, 7
          %v1931 = vsub.s32 0, %v1930
          %v1932 = vrot.slane %v1686, %v1931
          %v1933 = vmul.f32 %v1927, %v1932
          %v1934 = vmul.f32 %v1928, %v1932
          %v1935 = vlaneseq
          %v1936 = vshrl.u32 %v1935, 7
          %v1937 = vsub.s32 0, %v1936
          %v1938 = vrot.slane %v1687, %v1937
          %v1939 = vadd.f32 %v1933, %v1938
          %v1940 = vadd.f32 %v1934, %v1938
          %v1941 = vld [vmem:[#allocation9] sm:$0xff]
          %v1942 = vld [vmem:[#allocation9 + $0x8] sm:$0xff]
          %v1943 = vld [vmem:[#allocation9 + $0x10] sm:$0xff]
          %v1944 = vld [vmem:[#allocation9 + $0x18] sm:$0xff]
          %v1945 = vld [vmem:[%s7] sm:$0x1]
          %v1947 = vlaneseq
          %v1948 = vshrl.u32 %v1947, 7
          %v1949 = vsub.s32 0, %v1948
          %v1950 = vrot.slane %v1945, %v1949
          %v1953 = vsel %vm1818, %v1939, 0
          %v1956 = vsel %vm1818, %v1940, 0
          %1958 = vmatprep.subr.mxu0 0.0
          %1959 = vmatpush1.msra.mxu0 0.0
          %1960 = vmatprep.subr.mxu0 0.0
          %1961 = vmatpush1.msra.mxu0 0.0
          %1962 = vmatprep.subr.mxu0 0.0
          %1963 = vmatpush1.msra.mxu0 0.0
          %1964 = vmatprep.subr.mxu0 0.0
          %1965 = vmatpush1.msra.mxu0 0.0
          %1966 = vmatprep.subr.mxu0 0.0
          %1967 = vmatpush1.msra.mxu0 0.0
          %1968 = vmatprep.subr.mxu0 0.0
          %1969 = vmatpush1.msra.mxu0 0.0
          %1970 = vmatprep.subr.mxu0 0.0
          %1971 = vmatpush1.msra.mxu0 0.0
          %1972 = vmatprep.subr.mxu0 0.0
          %1973 = vmatpush1.msra.mxu0 0.0
          %1974 = vmatprep.subr.mxu0 0.0
          %1975 = vmatpush1.msra.mxu0 0.0
          %1976 = vmatprep.subr.mxu0 0.0
          %1977 = vmatpush1.msra.mxu0 0.0
          %1978 = vmatprep.subr.mxu0 0.0
          %1979 = vmatpush1.msra.mxu0 0.0
          %1980 = vmatprep.subr.mxu0 0.0
          %1981 = vmatpush1.msra.mxu0 0.0
          %1982 = vmatprep.subr.mxu0 0.0
          %1983 = vmatpush1.msra.mxu0 %v1944
          %1984 = vmatprep.subr.mxu0 0.0
          %1985 = vmatpush1.msra.mxu0 %v1943
          %1986 = vmatprep.subr.mxu0 0.0
          %1987 = vmatpush1.msra.mxu0 %v1942
          %1988 = vmatprep.subr.mxu0 0.0
          %1989 = vmatpush1.msra.mxu0 %v1941
          %1990 = vmatprep.subr.mxu0 0.0
          %1991 = vmatpush2.msra.mxu0 0.0
          %1992 = vmatprep.subr.mxu0 0.0
          %1993 = vmatpush2.msra.mxu0 0.0
          %1994 = vmatprep.subr.mxu0 0.0
          %1995 = vmatpush2.msra.mxu0 0.0
          %1996 = vmatprep.subr.mxu0 0.0
          %1997 = vmatpush2.msra.mxu0 0.0
          %1998 = vmatprep.subr.mxu0 0.0
          %1999 = vmatpush2.msra.mxu0 0.0
          %2000 = vmatprep.subr.mxu0 0.0
          %2001 = vmatpush2.msra.mxu0 0.0
          %2002 = vmatprep.subr.mxu0 0.0
          %2003 = vmatpush2.msra.mxu0 0.0
          %2004 = vmatprep.subr.mxu0 0.0
          %2005 = vmatpush2.msra.mxu0 0.0
          %2006 = vmatprep.subr.mxu0 0.0
          %2007 = vmatpush2.msra.mxu0 0.0
          %2008 = vmatprep.subr.mxu0 0.0
          %2009 = vmatpush2.msra.mxu0 0.0
          %2010 = vmatprep.subr.mxu0 0.0
          %2011 = vmatpush2.msra.mxu0 0.0
          %2012 = vmatprep.subr.mxu0 0.0
          %2013 = vmatpush2.msra.mxu0 0.0
          %2014 = vmatprep.subr.mxu0 0.0
          %2015 = vmatpush2.msra.mxu0 0.0
          %2016 = vmatprep.subr.mxu0 0.0
          %2017 = vmatpush2.msra.mxu0 0.0
          %2018 = vmatprep.subr.mxu0 0.0
          %2019 = vmatpush2.msra.mxu0 0.0
          %2020 = vmatprep.subr.mxu0 0.0
          %2021 = vmatpush2.msra.mxu0 0.0
          %2022 = vmatprep.mubr.f32.mxu0 0.0
          %2023 = vmatmul.mubr.f32.gmra.mxu0 %v1953
          %v2024 = vpop.f32.mrf.mxu0
          %v2025 = vadd.f32 %v1950, %v2024
          %v2026 = vpop.f32.mrf.mxu0
          %2027 = vmatprep.mubr.f32.mxu0 0.0
          %2028 = vmatmul.mubr.f32.gmra.mxu0 %v1956
          %v2029 = vpop.f32.mrf.mxu0
          %v2030 = vadd.f32 %v1950, %v2029
          %v2031 = vpop.f32.mrf.mxu0
          %2032 = vdwg.mxu0
          %v2033 = vmax.f32 %v2025, 0.0
          %v2034 = vmax.f32 %v2030, 0.0
          %v2035 = vld [vmem:[#allocation12] sm:$0xff]
          %v2036 = vld [vmem:[#allocation12 + $0x8] sm:$0xff]
          %v2037 = vld [vmem:[#allocation12 + $0x10] sm:$0xff]
          %v2038 = vld [vmem:[#allocation12 + $0x18] sm:$0xff]
          %v2039 = vlaneseq
          %v2040 = vshrl.u32 %v2039, 7
          %v2041 = vsub.s32 0, %v2040
          %v2042 = vrot.slane %v1690, %v2041
          %v2044 = vsel %vm1818, %v2033, 0
          %v2047 = vsel %vm1818, %v2034, 0
          %2049 = vmatprep.subr.mxu0 0.0
          %2050 = vmatpush1.msra.mxu0 0.0
          %2051 = vmatprep.subr.mxu0 0.0
          %2052 = vmatpush1.msra.mxu0 0.0
          %2053 = vmatprep.subr.mxu0 0.0
          %2054 = vmatpush1.msra.mxu0 0.0
          %2055 = vmatprep.subr.mxu0 0.0
          %2056 = vmatpush1.msra.mxu0 0.0
          %2057 = vmatprep.subr.mxu0 0.0
          %2058 = vmatpush1.msra.mxu0 0.0
          %2059 = vmatprep.subr.mxu0 0.0
          %2060 = vmatpush1.msra.mxu0 0.0
          %2061 = vmatprep.subr.mxu0 0.0
          %2062 = vmatpush1.msra.mxu0 0.0
          %2063 = vmatprep.subr.mxu0 0.0
          %2064 = vmatpush1.msra.mxu0 0.0
          %2065 = vmatprep.subr.mxu0 0.0
          %2066 = vmatpush1.msra.mxu0 0.0
          %2067 = vmatprep.subr.mxu0 0.0
          %2068 = vmatpush1.msra.mxu0 0.0
          %2069 = vmatprep.subr.mxu0 0.0
          %2070 = vmatpush1.msra.mxu0 0.0
          %2071 = vmatprep.subr.mxu0 0.0
          %2072 = vmatpush1.msra.mxu0 0.0
          %2073 = vmatprep.subr.mxu0 0.0
          %2074 = vmatpush1.msra.mxu0 %v2038
          %2075 = vmatprep.subr.mxu0 0.0
          %2076 = vmatpush1.msra.mxu0 %v2037
          %2077 = vmatprep.subr.mxu0 0.0
          %2078 = vmatpush1.msra.mxu0 %v2036
          %2079 = vmatprep.subr.mxu0 0.0
          %2080 = vmatpush1.msra.mxu0 %v2035
          %2081 = vmatprep.subr.mxu0 0.0
          %2082 = vmatpush2.msra.mxu0 0.0
          %2083 = vmatprep.subr.mxu0 0.0
          %2084 = vmatpush2.msra.mxu0 0.0
          %2085 = vmatprep.subr.mxu0 0.0
          %2086 = vmatpush2.msra.mxu0 0.0
          %2087 = vmatprep.subr.mxu0 0.0
          %2088 = vmatpush2.msra.mxu0 0.0
          %2089 = vmatprep.subr.mxu0 0.0
          %2090 = vmatpush2.msra.mxu0 0.0
          %2091 = vmatprep.subr.mxu0 0.0
          %2092 = vmatpush2.msra.mxu0 0.0
          %2093 = vmatprep.subr.mxu0 0.0
          %2094 = vmatpush2.msra.mxu0 0.0
          %2095 = vmatprep.subr.mxu0 0.0
          %2096 = vmatpush2.msra.mxu0 0.0
          %2097 = vmatprep.subr.mxu0 0.0
          %2098 = vmatpush2.msra.mxu0 0.0
          %2099 = vmatprep.subr.mxu0 0.0
          %2100 = vmatpush2.msra.mxu0 0.0
          %2101 = vmatprep.subr.mxu0 0.0
          %2102 = vmatpush2.msra.mxu0 0.0
          %2103 = vmatprep.subr.mxu0 0.0
          %2104 = vmatpush2.msra.mxu0 0.0
          %2105 = vmatprep.subr.mxu0 0.0
          %2106 = vmatpush2.msra.mxu0 0.0
          %2107 = vmatprep.subr.mxu0 0.0
          %2108 = vmatpush2.msra.mxu0 0.0
          %2109 = vmatprep.subr.mxu0 0.0
          %2110 = vmatpush2.msra.mxu0 0.0
          %2111 = vmatprep.subr.mxu0 0.0
          %2112 = vmatpush2.msra.mxu0 0.0
          %2113 = vmatprep.mubr.f32.mxu0 0.0
          %2114 = vmatmul.mubr.f32.gmra.mxu0 %v2044
          %v2115 = vpop.f32.mrf.mxu0
          %v2116 = vadd.f32 %v2042, %v2115
          %v2117 = vpop.f32.mrf.mxu0
          %2118 = vmatprep.mubr.f32.mxu0 0.0
          %2119 = vmatmul.mubr.f32.gmra.mxu0 %v2047
          %v2120 = vpop.f32.mrf.mxu0
          %v2121 = vadd.f32 %v2042, %v2120
          %v2122 = vpop.f32.mrf.mxu0
          %2123 = vdwg.mxu0
          %v2124 = vadd.f32 %v2116, %v1939
          %v2125 = vadd.f32 %v2121, %v1940
          %v2126 = vsel %vm1818, %v2124, 0.0
          %2127 = vadd.xlane.f32.xlu0 %v2126
          %v2128 = vpop.xlane.xlu0 %2127
          %v2129 = vsel %vm1818, %v2125, 0.0
          %2130 = vadd.xlane.f32.xlu0 %v2129
          %v2131 = vpop.xlane.xlu0 %2130
          %v2132 = vmul.f32 %v2128, %v1908
          %v2133 = vmul.f32 %v2131, %v1908
          %v2134 = vsub.f32 %v2124, %v2132
          %v2135 = vsub.f32 %v2125, %v2133
          %v2136 = vmul.f32 %v2134, %v2134
          %v2137 = vmul.f32 %v2135, %v2135
          %v2138 = vsel %vm1818, %v2136, 0.0
          %2139 = vadd.xlane.f32.xlu0 %v2138
          %v2140 = vpop.xlane.xlu0 %2139
          %v2141 = vsel %vm1818, %v2137, 0.0
          %2142 = vadd.xlane.f32.xlu0 %v2141
          %v2143 = vpop.xlane.xlu0 %2142
          %v2144 = vmul.f32 %v2140, %v1908
          %v2145 = vmul.f32 %v2143, %v1908
          %v2146 = vadd.f32 %v2144, 1e-05
          %v2147 = vadd.f32 %v2145, 1e-05
          %v2148 = vrsqrt.pop %v2146
          %v2149 = vrsqrt.pop %v2147
          %v2150 = vmul.f32 %v2134, %v2148
          %v2151 = vmul.f32 %v2135, %v2149
          %v2152 = vlaneseq
          %v2153 = vshrl.u32 %v2152, 7
          %v2154 = vsub.s32 0, %v2153
          %v2155 = vrot.slane %v1688, %v2154
          %v2156 = vmul.f32 %v2150, %v2155
          %v2157 = vmul.f32 %v2151, %v2155
          %v2158 = vlaneseq
          %v2159 = vshrl.u32 %v2158, 7
          %v2160 = vsub.s32 0, %v2159
          %v2161 = vrot.slane %v1689, %v2160
          %v2162 = vadd.f32 %v2156, %v2161
          %v2163 = vadd.f32 %v2157, %v2161
          %2164 = vst.msk [vmem:[%s440] sm:$0xff] %vm1818, %v2162
          %2165 = vst.msk [vmem:[%s440 + $0x8] sm:$0xff] %vm1818, %v2163
        $region76: #{encoder_layer_forward.1} parent=59 // pred_fallthru
          _
        %s2166 = sand.u32 %s275, 1
        %s2167 = scalar_lea.sflag [#allocation11], %s2166
        %s2168 = sand.u32 %s275, 1
        %s2169 = smul.addr %s2168, 16
        %s2170 = scalar_lea.vmem [#allocation14], %s2169
        // Predicated region
        $region77: #{encoder_layer_forward.1} parent=59 // pred_check
          %p2171 = pneg %p285
        $region78: #{encoder_layer_forward.1} parent=59 // pred_check_branch
          %2173 = sbr.rel (%p2171) target = $region80
        $region79: #{encoder_layer_forward.1} parent=59 // pred_region
          %s2175 = ssub.s32 256, 256
          %2176 = vsyncadd %s2167, %s2175
          %s2177 = smul.addr %s30, 2
          %s2178 = smul.addr %s2177, 128
          %s2179 = scalar_lea.hbm %s10, %s2178
          %s2180 = sshll.u32 %s2170, 4
          %s2181 = int_to_ptr.vmem [resolvable:$true] %s2180
          %2186 = dma.vmem_to_hbm [thread:$0]  %s2181, 256, %s2179, %s2167, 128, 128, 8
        $region80: #{encoder_layer_forward.1} parent=59 // pred_fallthru
          _
      $region60: #{encoder_layer_forward.1} parent=5 // pred_fallthru
        _
      %p2187 = scmp.le.s32.totalorder 2, %s21
      // Predicated region
      $region81: #{encoder_layer_forward.1} parent=5 // pred_check
        %p2188 = pneg %p2187
      $region82: #{encoder_layer_forward.1} parent=5 // pred_check_branch
        %2190 = sbr.rel (%p2188) target = $region84
      $region83: #{encoder_layer_forward.1} parent=5 // pred_region
        %s2191 = ssub.s32 %s21, 2
        // Predicated region
        $region85: #{encoder_layer_forward.1} parent=83 // pred_check
          %p2192 = pneg %p291
        $region86: #{encoder_layer_forward.1} parent=83 // pred_check_branch
          %2194 = sbr.rel (%p2192) target = $region88
        $region87: #{encoder_layer_forward.1} parent=83 // pred_region
          %s2195 = sand.u32 %s276, 1
          %s2196 = scalar_lea.sflag [#allocation11], %s2195
          %s2197 = sand.u32 %s276, 1
          %s2198 = smul.addr %s2197, 16
          %s2199 = scalar_lea.vmem [#allocation14], %s2198
          %2200 = dma.done %s2196, 256
        $region88: #{encoder_layer_forward.1} parent=83 // pred_fallthru
          _
      $region84: #{encoder_layer_forward.1} parent=5 // pred_fallthru
        _
    $region6: #{encoder_layer_forward.1} parent=1 // loop_footer
      %s25 = sadd.s32 1, %s21
    $region7: #{encoder_layer_forward.1} parent=1 // loop_footer_branch
      %20 = sbr.rel target = $region3
    $region8: #{encoder_layer_forward.1} parent=1 // loop_exit
      _
    %2201 = vsyncpa [#allocation10], 1
    %s2202 = scalar_lea.sflag [#allocation10], 1
    %2203 = vsyncpa %s2202, 1
    %2204 = vsyncpa [#allocation13], 1
    %2205 = vsyncpa [#allocation11], 1
    %s2206 = scalar_lea.sflag [#allocation11], 1
    %2207 = vsyncpa %s2206, 1

</llo_original>
